<compile_context>
chip_gen: v7x
topology: tpu7x:2x2x1
jax: 0.10.0
libtpu: 0.0.40
codegen_flags: <defaults>
</compile_context>

<pallas_src>
import functools

import jax
import jax.numpy as jnp
import numpy as np
from jax.experimental import pallas as pl
from jax.experimental.pallas import tpu as pltpu


def _lstm_encoder_kernel(x_ref, wih_ref, whh_ref, b_ref, out_ref, xp_ref,
                         *, seq_len, batch):
    """x_ref: (S*B, F) step-major rows; weights gate-blocked / lane-padded."""
    S, B = seq_len, batch
    Hp = whh_ref.shape[0]            # lane-padded hidden size (multiple of 128)
    H = out_ref.shape[1]             # true hidden size (embedding_size)

    wih = wih_ref[...]               # (F, 4*Hp)   bf16, gate-blocked lanes
    whh = whh_ref[...]               # (Hp, 4*Hp)  bf16
    bias = b_ref[...]                # (1, 4*Hp)   f32 == b_ih + b_hh

    # ONE fused, time-invariant input-projection matmul for all (t, b) rows,
    # bias folded in.  Written to VMEM scratch so per-step values are not all
    # live in vregs; the per-step loads hide under the recurrence matmul.
    xp_ref[...] = (
        jnp.dot(x_ref[...].astype(jnp.bfloat16), wih,
                preferred_element_type=jnp.float32)
        + bias
    )

    h = jnp.zeros((B, Hp), jnp.float32)
    c = jnp.zeros((B, Hp), jnp.float32)

    # Trace-time-unrolled recurrence: per step exactly one bf16 MXU matmul on
    # the serial h->h critical path plus f32 elementwise gate math.
    # PyTorch gate ordering [i, f, g, o]; each gate owns a full 128-lane
    # block, so these slices are whole-lane-tile selects (no lane shuffles).
    for t in range(S):
        xp_t = xp_ref[pl.ds(t * B, B), :]          # contiguous step-major rows
        gates = xp_t + jnp.dot(h.astype(jnp.bfloat16), whh,
                               preferred_element_type=jnp.float32)
        i_g = jax.nn.sigmoid(gates[:, 0 * Hp:1 * Hp])
        f_g = jax.nn.sigmoid(gates[:, 1 * Hp:2 * Hp])
        g_g = jnp.tanh(gates[:, 2 * Hp:3 * Hp])
        o_g = jax.nn.sigmoid(gates[:, 3 * Hp:4 * Hp])
        c = f_g * c + i_g * g_g
        h = o_g * jnp.tanh(c)

    # Final hidden state == encoder output (only the valid H lanes).
    # Masked partial-lane store; negligible at (B, 32).
    out_ref[...] = h[:, :H].astype(out_ref.dtype)


def prepare_lstm_params(w_ih, w_hh, b_ih, b_hh):
    """Host-side, once-per-model weight prep: transpose + per-gate lane padding.

    w_ih: (4H, F), w_hh: (4H, H), b_ih/b_hh: (4H,)  [PyTorch layout, gates i,f,g,o]
    Returns (wih_p (F, 4*Hp) bf16, whh_p (Hp, 4*Hp) bf16, bias_p (1, 4*Hp) f32, H).
    """
    w_ih = np.asarray(w_ih, np.float32)
    w_hh = np.asarray(w_hh, np.float32)
    b = np.asarray(b_ih, np.float32) + np.asarray(b_hh, np.float32)

    H4, F = w_ih.shape
    H = H4 // 4
    Hp = max(128, -(-H // 128) * 128)      # each gate block -> full lane tiles

    wih_p = np.zeros((F, 4 * Hp), np.float32)
    whh_p = np.zeros((Hp, 4 * Hp), np.float32)
    b_p = np.zeros((1, 4 * Hp), np.float32)
    for g in range(4):
        wih_p[:, g * Hp:g * Hp + H] = w_ih[g * H:(g + 1) * H, :].T
        whh_p[:H, g * Hp:g * Hp + H] = w_hh[g * H:(g + 1) * H, :].T
        b_p[0, g * Hp:g * Hp + H] = b[g * H:(g + 1) * H]

    # bf16 matmul operands (zero pads cast exactly), f32 bias/accumulation.
    return (jnp.asarray(wih_p, jnp.bfloat16),
            jnp.asarray(whh_p, jnp.bfloat16),
            jnp.asarray(b_p, jnp.float32),
            H)


@functools.partial(jax.jit, static_argnames=("hidden_size",))
def lstm_encoder_forward(x, wih_p, whh_p, bias_p, hidden_size):
    """x: (B, S, F) in the module's native batch-first layout.

    Returns h_T of shape (B, hidden_size) — equivalent to hidden_state[-1].
    """
    B, S, F = x.shape
    Hp = whh_p.shape[0]
    # Step-major row layout (row = t*B + b) so the kernel's per-step
    # projection slice is a contiguous sublane window.  Tiny XLA relayout on
    # (B,S,F), entirely off the serial in-kernel critical path.
    x2 = jnp.swapaxes(x.astype(jnp.float32), 0, 1).reshape(S * B, F)

    kernel = functools.partial(_lstm_encoder_kernel, seq_len=S, batch=B)
    # Whole-array VMEM residency (no grid, no pipelining): x + weights +
    # scratch total well under 1 MiB at these sizes on every generation.
    in_specs = [pl.BlockSpec(memory_space=pltpu.MemorySpace.VMEM) for _ in range(4)]
    out_spec = pl.BlockSpec(memory_space=pltpu.MemorySpace.VMEM)
    return pl.pallas_call(
        kernel,
        out_shape=jax.ShapeDtypeStruct((B, hidden_size), jnp.float32),
        in_specs=in_specs,
        out_specs=out_spec,
        scratch_shapes=[pltpu.VMEM((S * B, 4 * Hp), jnp.float32)],
    )(x2, wih_p, whh_p, bias_p)


def _reference_lstm_encoder(x, w_ih, w_hh, b_ih, b_hh):
    """Pure-JAX reference matching PyTorch nn.LSTM (num_layers=1), full f32."""
    B, S, F = x.shape
    H = w_hh.shape[1]
    h = jnp.zeros((B, H), jnp.float32)
    c = jnp.zeros((B, H), jnp.float32)

    def step(carry, x_t):
        h, c = carry
        gates = x_t @ w_ih.T + h @ w_hh.T + b_ih + b_hh
        i_g = jax.nn.sigmoid(gates[:, 0 * H:1 * H])
        f_g = jax.nn.sigmoid(gates[:, 1 * H:2 * H])
        g_g = jnp.tanh(gates[:, 2 * H:3 * H])
        o_g = jax.nn.sigmoid(gates[:, 3 * H:4 * H])
        c_new = f_g * c + i_g * g_g
        h_new = o_g * jnp.tanh(c_new)
        return (h_new, c_new), None

    (h, c), _ = jax.lax.scan(step, (h, c), jnp.transpose(x, (1, 0, 2)))
    return h


if __name__ == "__main__":
    # Module hyperparameters (small, consistent with the forward pass)
    batch = 2          # NOTE: B >= 8 fills f32 sublanes "for free" — caller choice
    seq_len = 8
    no_features = 4
    embedding_size = 32  # hidden size H

    key = jax.random.PRNGKey(0)
    kx, k1, k2, k3, k4 = jax.random.split(key, 5)

    # Deterministic parameter init (PyTorch-style uniform(-1/sqrt(H), 1/sqrt(H)))
    bound = 1.0 / np.sqrt(embedding_size)
    w_ih = jax.random.uniform(k1, (4 * embedding_size, no_features),
                              jnp.float32, -bound, bound)
    w_hh = jax.random.uniform(k2, (4 * embedding_size, embedding_size),
                              jnp.float32, -bound, bound)
    b_ih = jax.random.uniform(k3, (4 * embedding_size,), jnp.float32, -bound, bound)
    b_hh = jax.random.uniform(k4, (4 * embedding_size,), jnp.float32, -bound, bound)

    x = jax.random.normal(kx, (batch, seq_len, no_features), jnp.float32)

    # One-time (host-side) weight preparation, reused across forward calls.
    wih_p, whh_p, bias_p, hidden = prepare_lstm_params(w_ih, w_hh, b_ih, b_hh)

    out = lstm_encoder_forward(x, wih_p, whh_p, bias_p, hidden_size=hidden)
    out = jax.block_until_ready(out)

    ref = _reference_lstm_encoder(x, w_ih, w_hh, b_ih, b_hh)
    ref = jax.block_until_ready(ref)

    assert out.shape == (batch, embedding_size)
    # Tolerance relaxed for bf16 matmul operands (f32 accumulation & gate math).
    np.testing.assert_allclose(np.asarray(out), np.asarray(ref), rtol=2e-2, atol=2e-2)
    print("KERNEL_OK")
</pallas_src>

<mosaic_0001>
module attributes {stable_mosaic.version = 11 : i64} {
  func.func @_lstm_encoder_kernel(%arg0: memref<16x4xf32, #tpu.memory_space<vmem>>, %arg1: memref<4x512xbf16, #tpu.memory_space<vmem>>, %arg2: memref<128x512xbf16, #tpu.memory_space<vmem>>, %arg3: memref<1x512xf32, #tpu.memory_space<vmem>>, %arg4: memref<2x32xf32, #tpu.memory_space<vmem>>, %arg5: memref<16x512xf32, #tpu.memory_space<vmem>>) attributes {dimension_semantics = [], scalar_prefetch = 0 : i64, scratch_operands = 1 : i64, tpu.core_type = #tpu.core_type<tc>} {
    %c0 = arith.constant 0 : index
    %c0_0 = arith.constant 0 : index
    %0 = vector.load %arg1[%c0, %c0_0] : memref<4x512xbf16, #tpu.memory_space<vmem>>, vector<4x512xbf16>
    %c0_1 = arith.constant 0 : index
    %c0_2 = arith.constant 0 : index
    %1 = vector.load %arg2[%c0_1, %c0_2] : memref<128x512xbf16, #tpu.memory_space<vmem>>, vector<128x512xbf16>
    %c0_3 = arith.constant 0 : index
    %c0_4 = arith.constant 0 : index
    %2 = vector.load %arg3[%c0_3, %c0_4] : memref<1x512xf32, #tpu.memory_space<vmem>>, vector<1x512xf32>
    %c0_5 = arith.constant 0 : index
    %c0_6 = arith.constant 0 : index
    %3 = vector.load %arg0[%c0_5, %c0_6] : memref<16x4xf32, #tpu.memory_space<vmem>>, vector<16x4xf32>
    %4 = arith.truncf %3 : vector<16x4xf32> to vector<16x4xbf16>
    %cst = arith.constant dense<0.000000e+00> : vector<16x512xf32>
    %5 = tpu.matmul %4, %0, %cst {dimension_numbers = #tpu.dot_dimension_numbers<[1], [0], [0], [1], [0, 0, 1, 1], [], []>} : vector<16x4xbf16>, vector<4x512xbf16>, vector<16x512xf32> -> vector<16x512xf32>
    %6 = vector.broadcast %2 : vector<1x512xf32> to vector<16x512xf32>
    %7 = arith.addf %5, %6 : vector<16x512xf32>
    %c0_7 = arith.constant 0 : index
    %c0_8 = arith.constant 0 : index
    %8 = vector.load %arg5[%c0_7, %c0_8] : memref<16x512xf32, #tpu.memory_space<vmem>>, vector<16x512xf32>
    tpu.vector_store %arg5[%c0_7, %c0_8], %7 {strides = array<i32>} : memref<16x512xf32, #tpu.memory_space<vmem>>, vector<16x512xf32>,
    %cst_9 = arith.constant 0.000000e+00 : f32
    %9 = vector.broadcast %cst_9 : f32 to vector<2x128xf32>
    %cst_10 = arith.constant 0.000000e+00 : f32
    %10 = vector.broadcast %cst_10 : f32 to vector<2x128xf32>
    %c0_11 = arith.constant 0 : index
    %c0_12 = arith.constant 0 : index
    %11 = vector.load %arg5[%c0_11, %c0_12] : memref<16x512xf32, #tpu.memory_space<vmem>>, vector<2x512xf32>
    %12 = arith.truncf %9 : vector<2x128xf32> to vector<2x128xbf16>
    %cst_13 = arith.constant dense<0.000000e+00> : vector<2x512xf32>
    %13 = tpu.matmul %12, %1, %cst_13 {dimension_numbers = #tpu.dot_dimension_numbers<[1], [0], [0], [1], [0, 0, 1, 1], [], []>} : vector<2x128xbf16>, vector<128x512xbf16>, vector<2x512xf32> -> vector<2x512xf32>
    %14 = arith.addf %11, %13 : vector<2x512xf32>
    %15 = vector.extract_strided_slice %14 {offsets = [0, 0], sizes = [2, 128], strides = [1, 1]} : vector<2x512xf32> to vector<2x128xf32>
    %16 = arith.negf %15 : vector<2x128xf32>
    %17 = math.exp %16 : vector<2x128xf32>
    %cst_14 = arith.constant 1.000000e+00 : f32
    %18 = vector.broadcast %cst_14 : f32 to vector<2x128xf32>
    %19 = arith.addf %18, %17 : vector<2x128xf32>
    %20 = arith.divf %18, %19 : vector<2x128xf32>
    %21 = vector.extract_strided_slice %14 {offsets = [0, 128], sizes = [2, 128], strides = [1, 1]} : vector<2x512xf32> to vector<2x128xf32>
    %22 = arith.negf %21 : vector<2x128xf32>
    %23 = math.exp %22 : vector<2x128xf32>
    %cst_15 = arith.constant 1.000000e+00 : f32
    %24 = vector.broadcast %cst_15 : f32 to vector<2x128xf32>
    %25 = arith.addf %24, %23 : vector<2x128xf32>
    %26 = arith.divf %24, %25 : vector<2x128xf32>
    %27 = vector.extract_strided_slice %14 {offsets = [0, 256], sizes = [2, 128], strides = [1, 1]} : vector<2x512xf32> to vector<2x128xf32>
    %28 = math.tanh %27 : vector<2x128xf32>
    %29 = vector.extract_strided_slice %14 {offsets = [0, 384], sizes = [2, 128], strides = [1, 1]} : vector<2x512xf32> to vector<2x128xf32>
    %30 = arith.negf %29 : vector<2x128xf32>
    %31 = math.exp %30 : vector<2x128xf32>
    %cst_16 = arith.constant 1.000000e+00 : f32
    %32 = vector.broadcast %cst_16 : f32 to vector<2x128xf32>
    %33 = arith.addf %32, %31 : vector<2x128xf32>
    %34 = arith.divf %32, %33 : vector<2x128xf32>
    %35 = arith.mulf %26, %10 : vector<2x128xf32>
    %36 = arith.mulf %20, %28 : vector<2x128xf32>
    %37 = arith.addf %35, %36 : vector<2x128xf32>
    %38 = math.tanh %37 : vector<2x128xf32>
    %39 = arith.mulf %34, %38 : vector<2x128xf32>
    %c2 = arith.constant 2 : index
    %c0_17 = arith.constant 0 : index
    %40 = vector.load %arg5[%c2, %c0_17] : memref<16x512xf32, #tpu.memory_space<vmem>>, vector<2x512xf32>
    %41 = arith.truncf %39 : vector<2x128xf32> to vector<2x128xbf16>
    %cst_18 = arith.constant dense<0.000000e+00> : vector<2x512xf32>
    %42 = tpu.matmul %41, %1, %cst_18 {dimension_numbers = #tpu.dot_dimension_numbers<[1], [0], [0], [1], [0, 0, 1, 1], [], []>} : vector<2x128xbf16>, vector<128x512xbf16>, vector<2x512xf32> -> vector<2x512xf32>
    %43 = arith.addf %40, %42 : vector<2x512xf32>
    %44 = vector.extract_strided_slice %43 {offsets = [0, 0], sizes = [2, 128], strides = [1, 1]} : vector<2x512xf32> to vector<2x128xf32>
    %45 = arith.negf %44 : vector<2x128xf32>
    %46 = math.exp %45 : vector<2x128xf32>
    %cst_19 = arith.constant 1.000000e+00 : f32
    %47 = vector.broadcast %cst_19 : f32 to vector<2x128xf32>
    %48 = arith.addf %47, %46 : vector<2x128xf32>
    %49 = arith.divf %47, %48 : vector<2x128xf32>
    %50 = vector.extract_strided_slice %43 {offsets = [0, 128], sizes = [2, 128], strides = [1, 1]} : vector<2x512xf32> to vector<2x128xf32>
    %51 = arith.negf %50 : vector<2x128xf32>
    %52 = math.exp %51 : vector<2x128xf32>
    %cst_20 = arith.constant 1.000000e+00 : f32
    %53 = vector.broadcast %cst_20 : f32 to vector<2x128xf32>
    %54 = arith.addf %53, %52 : vector<2x128xf32>
    %55 = arith.divf %53, %54 : vector<2x128xf32>
    %56 = vector.extract_strided_slice %43 {offsets = [0, 256], sizes = [2, 128], strides = [1, 1]} : vector<2x512xf32> to vector<2x128xf32>
    %57 = math.tanh %56 : vector<2x128xf32>
    %58 = vector.extract_strided_slice %43 {offsets = [0, 384], sizes = [2, 128], strides = [1, 1]} : vector<2x512xf32> to vector<2x128xf32>
    %59 = arith.negf %58 : vector<2x128xf32>
    %60 = math.exp %59 : vector<2x128xf32>
    %cst_21 = arith.constant 1.000000e+00 : f32
    %61 = vector.broadcast %cst_21 : f32 to vector<2x128xf32>
    %62 = arith.addf %61, %60 : vector<2x128xf32>
    %63 = arith.divf %61, %62 : vector<2x128xf32>
    %64 = arith.mulf %55, %37 : vector<2x128xf32>
    %65 = arith.mulf %49, %57 : vector<2x128xf32>
    %66 = arith.addf %64, %65 : vector<2x128xf32>
    %67 = math.tanh %66 : vector<2x128xf32>
    %68 = arith.mulf %63, %67 : vector<2x128xf32>
    %c4 = arith.constant 4 : index
    %c0_22 = arith.constant 0 : index
    %69 = vector.load %arg5[%c4, %c0_22] : memref<16x512xf32, #tpu.memory_space<vmem>>, vector<2x512xf32>
    %70 = arith.truncf %68 : vector<2x128xf32> to vector<2x128xbf16>
    %cst_23 = arith.constant dense<0.000000e+00> : vector<2x512xf32>
    %71 = tpu.matmul %70, %1, %cst_23 {dimension_numbers = #tpu.dot_dimension_numbers<[1], [0], [0], [1], [0, 0, 1, 1], [], []>} : vector<2x128xbf16>, vector<128x512xbf16>, vector<2x512xf32> -> vector<2x512xf32>
    %72 = arith.addf %69, %71 : vector<2x512xf32>
    %73 = vector.extract_strided_slice %72 {offsets = [0, 0], sizes = [2, 128], strides = [1, 1]} : vector<2x512xf32> to vector<2x128xf32>
    %74 = arith.negf %73 : vector<2x128xf32>
    %75 = math.exp %74 : vector<2x128xf32>
    %cst_24 = arith.constant 1.000000e+00 : f32
    %76 = vector.broadcast %cst_24 : f32 to vector<2x128xf32>
    %77 = arith.addf %76, %75 : vector<2x128xf32>
    %78 = arith.divf %76, %77 : vector<2x128xf32>
    %79 = vector.extract_strided_slice %72 {offsets = [0, 128], sizes = [2, 128], strides = [1, 1]} : vector<2x512xf32> to vector<2x128xf32>
    %80 = arith.negf %79 : vector<2x128xf32>
    %81 = math.exp %80 : vector<2x128xf32>
    %cst_25 = arith.constant 1.000000e+00 : f32
    %82 = vector.broadcast %cst_25 : f32 to vector<2x128xf32>
    %83 = arith.addf %82, %81 : vector<2x128xf32>
    %84 = arith.divf %82, %83 : vector<2x128xf32>
    %85 = vector.extract_strided_slice %72 {offsets = [0, 256], sizes = [2, 128], strides = [1, 1]} : vector<2x512xf32> to vector<2x128xf32>
    %86 = math.tanh %85 : vector<2x128xf32>
    %87 = vector.extract_strided_slice %72 {offsets = [0, 384], sizes = [2, 128], strides = [1, 1]} : vector<2x512xf32> to vector<2x128xf32>
    %88 = arith.negf %87 : vector<2x128xf32>
    %89 = math.exp %88 : vector<2x128xf32>
    %cst_26 = arith.constant 1.000000e+00 : f32
    %90 = vector.broadcast %cst_26 : f32 to vector<2x128xf32>
    %91 = arith.addf %90, %89 : vector<2x128xf32>
    %92 = arith.divf %90, %91 : vector<2x128xf32>
    %93 = arith.mulf %84, %66 : vector<2x128xf32>
    %94 = arith.mulf %78, %86 : vector<2x128xf32>
    %95 = arith.addf %93, %94 : vector<2x128xf32>
    %96 = math.tanh %95 : vector<2x128xf32>
    %97 = arith.mulf %92, %96 : vector<2x128xf32>
    %c6 = arith.constant 6 : index
    %c0_27 = arith.constant 0 : index
    %98 = vector.load %arg5[%c6, %c0_27] : memref<16x512xf32, #tpu.memory_space<vmem>>, vector<2x512xf32>
    %99 = arith.truncf %97 : vector<2x128xf32> to vector<2x128xbf16>
    %cst_28 = arith.constant dense<0.000000e+00> : vector<2x512xf32>
    %100 = tpu.matmul %99, %1, %cst_28 {dimension_numbers = #tpu.dot_dimension_numbers<[1], [0], [0], [1], [0, 0, 1, 1], [], []>} : vector<2x128xbf16>, vector<128x512xbf16>, vector<2x512xf32> -> vector<2x512xf32>
    %101 = arith.addf %98, %100 : vector<2x512xf32>
    %102 = vector.extract_strided_slice %101 {offsets = [0, 0], sizes = [2, 128], strides = [1, 1]} : vector<2x512xf32> to vector<2x128xf32>
    %103 = arith.negf %102 : vector<2x128xf32>
    %104 = math.exp %103 : vector<2x128xf32>
    %cst_29 = arith.constant 1.000000e+00 : f32
    %105 = vector.broadcast %cst_29 : f32 to vector<2x128xf32>
    %106 = arith.addf %105, %104 : vector<2x128xf32>
    %107 = arith.divf %105, %106 : vector<2x128xf32>
    %108 = vector.extract_strided_slice %101 {offsets = [0, 128], sizes = [2, 128], strides = [1, 1]} : vector<2x512xf32> to vector<2x128xf32>
    %109 = arith.negf %108 : vector<2x128xf32>
    %110 = math.exp %109 : vector<2x128xf32>
    %cst_30 = arith.constant 1.000000e+00 : f32
    %111 = vector.broadcast %cst_30 : f32 to vector<2x128xf32>
    %112 = arith.addf %111, %110 : vector<2x128xf32>
    %113 = arith.divf %111, %112 : vector<2x128xf32>
    %114 = vector.extract_strided_slice %101 {offsets = [0, 256], sizes = [2, 128], strides = [1, 1]} : vector<2x512xf32> to vector<2x128xf32>
    %115 = math.tanh %114 : vector<2x128xf32>
    %116 = vector.extract_strided_slice %101 {offsets = [0, 384], sizes = [2, 128], strides = [1, 1]} : vector<2x512xf32> to vector<2x128xf32>
    %117 = arith.negf %116 : vector<2x128xf32>
    %118 = math.exp %117 : vector<2x128xf32>
    %cst_31 = arith.constant 1.000000e+00 : f32
    %119 = vector.broadcast %cst_31 : f32 to vector<2x128xf32>
    %120 = arith.addf %119, %118 : vector<2x128xf32>
    %121 = arith.divf %119, %120 : vector<2x128xf32>
    %122 = arith.mulf %113, %95 : vector<2x128xf32>
    %123 = arith.mulf %107, %115 : vector<2x128xf32>
    %124 = arith.addf %122, %123 : vector<2x128xf32>
    %125 = math.tanh %124 : vector<2x128xf32>
    %126 = arith.mulf %121, %125 : vector<2x128xf32>
    %c8 = arith.constant 8 : index
    %c0_32 = arith.constant 0 : index
    %127 = vector.load %arg5[%c8, %c0_32] : memref<16x512xf32, #tpu.memory_space<vmem>>, vector<2x512xf32>
    %128 = arith.truncf %126 : vector<2x128xf32> to vector<2x128xbf16>
    %cst_33 = arith.constant dense<0.000000e+00> : vector<2x512xf32>
    %129 = tpu.matmul %128, %1, %cst_33 {dimension_numbers = #tpu.dot_dimension_numbers<[1], [0], [0], [1], [0, 0, 1, 1], [], []>} : vector<2x128xbf16>, vector<128x512xbf16>, vector<2x512xf32> -> vector<2x512xf32>
    %130 = arith.addf %127, %129 : vector<2x512xf32>
    %131 = vector.extract_strided_slice %130 {offsets = [0, 0], sizes = [2, 128], strides = [1, 1]} : vector<2x512xf32> to vector<2x128xf32>
    %132 = arith.negf %131 : vector<2x128xf32>
    %133 = math.exp %132 : vector<2x128xf32>
    %cst_34 = arith.constant 1.000000e+00 : f32
    %134 = vector.broadcast %cst_34 : f32 to vector<2x128xf32>
    %135 = arith.addf %134, %133 : vector<2x128xf32>
    %136 = arith.divf %134, %135 : vector<2x128xf32>
    %137 = vector.extract_strided_slice %130 {offsets = [0, 128], sizes = [2, 128], strides = [1, 1]} : vector<2x512xf32> to vector<2x128xf32>
    %138 = arith.negf %137 : vector<2x128xf32>
    %139 = math.exp %138 : vector<2x128xf32>
    %cst_35 = arith.constant 1.000000e+00 : f32
    %140 = vector.broadcast %cst_35 : f32 to vector<2x128xf32>
    %141 = arith.addf %140, %139 : vector<2x128xf32>
    %142 = arith.divf %140, %141 : vector<2x128xf32>
    %143 = vector.extract_strided_slice %130 {offsets = [0, 256], sizes = [2, 128], strides = [1, 1]} : vector<2x512xf32> to vector<2x128xf32>
    %144 = math.tanh %143 : vector<2x128xf32>
    %145 = vector.extract_strided_slice %130 {offsets = [0, 384], sizes = [2, 128], strides = [1, 1]} : vector<2x512xf32> to vector<2x128xf32>
    %146 = arith.negf %145 : vector<2x128xf32>
    %147 = math.exp %146 : vector<2x128xf32>
    %cst_36 = arith.constant 1.000000e+00 : f32
    %148 = vector.broadcast %cst_36 : f32 to vector<2x128xf32>
    %149 = arith.addf %148, %147 : vector<2x128xf32>
    %150 = arith.divf %148, %149 : vector<2x128xf32>
    %151 = arith.mulf %142, %124 : vector<2x128xf32>
    %152 = arith.mulf %136, %144 : vector<2x128xf32>
    %153 = arith.addf %151, %152 : vector<2x128xf32>
    %154 = math.tanh %153 : vector<2x128xf32>
    %155 = arith.mulf %150, %154 : vector<2x128xf32>
    %c10 = arith.constant 10 : index
    %c0_37 = arith.constant 0 : index
    %156 = vector.load %arg5[%c10, %c0_37] : memref<16x512xf32, #tpu.memory_space<vmem>>, vector<2x512xf32>
    %157 = arith.truncf %155 : vector<2x128xf32> to vector<2x128xbf16>
    %cst_38 = arith.constant dense<0.000000e+00> : vector<2x512xf32>
    %158 = tpu.matmul %157, %1, %cst_38 {dimension_numbers = #tpu.dot_dimension_numbers<[1], [0], [0], [1], [0, 0, 1, 1], [], []>} : vector<2x128xbf16>, vector<128x512xbf16>, vector<2x512xf32> -> vector<2x512xf32>
    %159 = arith.addf %156, %158 : vector<2x512xf32>
    %160 = vector.extract_strided_slice %159 {offsets = [0, 0], sizes = [2, 128], strides = [1, 1]} : vector<2x512xf32> to vector<2x128xf32>
    %161 = arith.negf %160 : vector<2x128xf32>
    %162 = math.exp %161 : vector<2x128xf32>
    %cst_39 = arith.constant 1.000000e+00 : f32
    %163 = vector.broadcast %cst_39 : f32 to vector<2x128xf32>
    %164 = arith.addf %163, %162 : vector<2x128xf32>
    %165 = arith.divf %163, %164 : vector<2x128xf32>
    %166 = vector.extract_strided_slice %159 {offsets = [0, 128], sizes = [2, 128], strides = [1, 1]} : vector<2x512xf32> to vector<2x128xf32>
    %167 = arith.negf %166 : vector<2x128xf32>
    %168 = math.exp %167 : vector<2x128xf32>
    %cst_40 = arith.constant 1.000000e+00 : f32
    %169 = vector.broadcast %cst_40 : f32 to vector<2x128xf32>
    %170 = arith.addf %169, %168 : vector<2x128xf32>
    %171 = arith.divf %169, %170 : vector<2x128xf32>
    %172 = vector.extract_strided_slice %159 {offsets = [0, 256], sizes = [2, 128], strides = [1, 1]} : vector<2x512xf32> to vector<2x128xf32>
    %173 = math.tanh %172 : vector<2x128xf32>
    %174 = vector.extract_strided_slice %159 {offsets = [0, 384], sizes = [2, 128], strides = [1, 1]} : vector<2x512xf32> to vector<2x128xf32>
    %175 = arith.negf %174 : vector<2x128xf32>
    %176 = math.exp %175 : vector<2x128xf32>
    %cst_41 = arith.constant 1.000000e+00 : f32
    %177 = vector.broadcast %cst_41 : f32 to vector<2x128xf32>
    %178 = arith.addf %177, %176 : vector<2x128xf32>
    %179 = arith.divf %177, %178 : vector<2x128xf32>
    %180 = arith.mulf %171, %153 : vector<2x128xf32>
    %181 = arith.mulf %165, %173 : vector<2x128xf32>
    %182 = arith.addf %180, %181 : vector<2x128xf32>
    %183 = math.tanh %182 : vector<2x128xf32>
    %184 = arith.mulf %179, %183 : vector<2x128xf32>
    %c12 = arith.constant 12 : index
    %c0_42 = arith.constant 0 : index
    %185 = vector.load %arg5[%c12, %c0_42] : memref<16x512xf32, #tpu.memory_space<vmem>>, vector<2x512xf32>
    %186 = arith.truncf %184 : vector<2x128xf32> to vector<2x128xbf16>
    %cst_43 = arith.constant dense<0.000000e+00> : vector<2x512xf32>
    %187 = tpu.matmul %186, %1, %cst_43 {dimension_numbers = #tpu.dot_dimension_numbers<[1], [0], [0], [1], [0, 0, 1, 1], [], []>} : vector<2x128xbf16>, vector<128x512xbf16>, vector<2x512xf32> -> vector<2x512xf32>
    %188 = arith.addf %185, %187 : vector<2x512xf32>
    %189 = vector.extract_strided_slice %188 {offsets = [0, 0], sizes = [2, 128], strides = [1, 1]} : vector<2x512xf32> to vector<2x128xf32>
    %190 = arith.negf %189 : vector<2x128xf32>
    %191 = math.exp %190 : vector<2x128xf32>
    %cst_44 = arith.constant 1.000000e+00 : f32
    %192 = vector.broadcast %cst_44 : f32 to vector<2x128xf32>
    %193 = arith.addf %192, %191 : vector<2x128xf32>
    %194 = arith.divf %192, %193 : vector<2x128xf32>
    %195 = vector.extract_strided_slice %188 {offsets = [0, 128], sizes = [2, 128], strides = [1, 1]} : vector<2x512xf32> to vector<2x128xf32>
    %196 = arith.negf %195 : vector<2x128xf32>
    %197 = math.exp %196 : vector<2x128xf32>
    %cst_45 = arith.constant 1.000000e+00 : f32
    %198 = vector.broadcast %cst_45 : f32 to vector<2x128xf32>
    %199 = arith.addf %198, %197 : vector<2x128xf32>
    %200 = arith.divf %198, %199 : vector<2x128xf32>
    %201 = vector.extract_strided_slice %188 {offsets = [0, 256], sizes = [2, 128], strides = [1, 1]} : vector<2x512xf32> to vector<2x128xf32>
    %202 = math.tanh %201 : vector<2x128xf32>
    %203 = vector.extract_strided_slice %188 {offsets = [0, 384], sizes = [2, 128], strides = [1, 1]} : vector<2x512xf32> to vector<2x128xf32>
    %204 = arith.negf %203 : vector<2x128xf32>
    %205 = math.exp %204 : vector<2x128xf32>
    %cst_46 = arith.constant 1.000000e+00 : f32
    %206 = vector.broadcast %cst_46 : f32 to vector<2x128xf32>
    %207 = arith.addf %206, %205 : vector<2x128xf32>
    %208 = arith.divf %206, %207 : vector<2x128xf32>
    %209 = arith.mulf %200, %182 : vector<2x128xf32>
    %210 = arith.mulf %194, %202 : vector<2x128xf32>
    %211 = arith.addf %209, %210 : vector<2x128xf32>
    %212 = math.tanh %211 : vector<2x128xf32>
    %213 = arith.mulf %208, %212 : vector<2x128xf32>
    %c14 = arith.constant 14 : index
    %c0_47 = arith.constant 0 : index
    %214 = vector.load %arg5[%c14, %c0_47] : memref<16x512xf32, #tpu.memory_space<vmem>>, vector<2x512xf32>
    %215 = arith.truncf %213 : vector<2x128xf32> to vector<2x128xbf16>
    %cst_48 = arith.constant dense<0.000000e+00> : vector<2x512xf32>
    %216 = tpu.matmul %215, %1, %cst_48 {dimension_numbers = #tpu.dot_dimension_numbers<[1], [0], [0], [1], [0, 0, 1, 1], [], []>} : vector<2x128xbf16>, vector<128x512xbf16>, vector<2x512xf32> -> vector<2x512xf32>
    %217 = arith.addf %214, %216 : vector<2x512xf32>
    %218 = vector.extract_strided_slice %217 {offsets = [0, 0], sizes = [2, 128], strides = [1, 1]} : vector<2x512xf32> to vector<2x128xf32>
    %219 = arith.negf %218 : vector<2x128xf32>
    %220 = math.exp %219 : vector<2x128xf32>
    %cst_49 = arith.constant 1.000000e+00 : f32
    %221 = vector.broadcast %cst_49 : f32 to vector<2x128xf32>
    %222 = arith.addf %221, %220 : vector<2x128xf32>
    %223 = arith.divf %221, %222 : vector<2x128xf32>
    %224 = vector.extract_strided_slice %217 {offsets = [0, 128], sizes = [2, 128], strides = [1, 1]} : vector<2x512xf32> to vector<2x128xf32>
    %225 = arith.negf %224 : vector<2x128xf32>
    %226 = math.exp %225 : vector<2x128xf32>
    %cst_50 = arith.constant 1.000000e+00 : f32
    %227 = vector.broadcast %cst_50 : f32 to vector<2x128xf32>
    %228 = arith.addf %227, %226 : vector<2x128xf32>
    %229 = arith.divf %227, %228 : vector<2x128xf32>
    %230 = vector.extract_strided_slice %217 {offsets = [0, 256], sizes = [2, 128], strides = [1, 1]} : vector<2x512xf32> to vector<2x128xf32>
    %231 = math.tanh %230 : vector<2x128xf32>
    %232 = vector.extract_strided_slice %217 {offsets = [0, 384], sizes = [2, 128], strides = [1, 1]} : vector<2x512xf32> to vector<2x128xf32>
    %233 = arith.negf %232 : vector<2x128xf32>
    %234 = math.exp %233 : vector<2x128xf32>
    %cst_51 = arith.constant 1.000000e+00 : f32
    %235 = vector.broadcast %cst_51 : f32 to vector<2x128xf32>
    %236 = arith.addf %235, %234 : vector<2x128xf32>
    %237 = arith.divf %235, %236 : vector<2x128xf32>
    %238 = arith.mulf %229, %211 : vector<2x128xf32>
    %239 = arith.mulf %223, %231 : vector<2x128xf32>
    %240 = arith.addf %238, %239 : vector<2x128xf32>
    %241 = math.tanh %240 : vector<2x128xf32>
    %242 = arith.mulf %237, %241 : vector<2x128xf32>
    %243 = vector.extract_strided_slice %242 {offsets = [0, 0], sizes = [2, 32], strides = [1, 1]} : vector<2x128xf32> to vector<2x32xf32>
    %c0_52 = arith.constant 0 : index
    %c0_53 = arith.constant 0 : index
    %244 = vector.load %arg4[%c0_52, %c0_53] : memref<2x32xf32, #tpu.memory_space<vmem>>, vector<2x32xf32>
    tpu.vector_store %arg4[%c0_52, %c0_53], %243 {strides = array<i32>} : memref<2x32xf32, #tpu.memory_space<vmem>>, vector<2x32xf32>,
    return
  }
}

</mosaic_0001>

<llo_original>
// kernel: lstm_encoder_forward.1
$region0: #{lstm_encoder_forward.1}
  #allocation0 [shape = 'u32[]', space=smem, size = 0x4, offset = 0x4, fixed_abs, tag = 'smem constant byte address 0x4 - core index']
  #allocation1 [shape = 'u32[144,128]{1,0:T(1,128)}', space=vmem, size = 0x12000, scoped, tag = 'internal scratch']
  #allocation2 [shape = 'f32[16,512]{1,0:T(8,128)}', space=vmem, size = 0x8000, scoped, tag = 'scratch operand']
  %s0 = inlined_call_operand.vmem [shape: f32[16,4], index: 0, kind: input, shape index: {}]
  %s1 = inlined_call_operand.vmem [shape: bf16[4,512], index: 1, kind: input, shape index: {}]
  %s2 = inlined_call_operand.hbm [shape: bf16[128,512], index: 2, kind: input, shape index: {}]
  %s3 = inlined_call_operand.vmem [shape: f32[1,512], index: 3, kind: input, shape index: {}]
  %s4 = inlined_call_operand.hbm [shape: f32[2,32], index: 4, kind: output, shape index: {}]
  %s5 = sld [smem:[#allocation0]]
  $region30: #{lstm_encoder_forward.1} parent=0
    _
  %s7 = ssub.s32 1, %s5
  %s8 = scalar_select 0, %s7, %s5
  $region1: #{lstm_encoder_forward.1} parent=0
    #allocation3 [shape = 'u8[131072]{0}', space=vmem, size = 0x20000, scoped, tag = 'input window, operand 2, single buffered']
    #allocation4 [shape = 's32[1]{0}', space=sflag, size = 0x4, scoped, tag = 'scoped memory for lstm_encoder_forward.1']
    #allocation5 [shape = 's32[1]{0}', space=sflag, size = 0x4, scoped, tag = 'scoped memory for lstm_encoder_forward.1']
    #allocation6 [shape = 'u8[1024]{0}', space=vmem, size = 0x400, scoped, tag = 'output window, operand 0, single buffered']
    %9 = vsyncpa [#allocation4], 0
    %10 = vsyncpa [#allocation5], 0
    // Predicated region
    $region2: #{lstm_encoder_forward.1} parent=1 // pred_check
      _
    $region3: #{lstm_encoder_forward.1} parent=1 // pred_check_branch
      %12 = sbr.rel (0) target = $region5
    $region4: #{lstm_encoder_forward.1} parent=1 // pred_region
      _
    $region5: #{lstm_encoder_forward.1} parent=1 // pred_fallthru
      _
    // Predicated region
    $region6: #{lstm_encoder_forward.1} parent=1 // pred_check
      _
    $region7: #{lstm_encoder_forward.1} parent=1 // pred_check_branch
      %14 = sbr.rel (0) target = $region9
    $region8: #{lstm_encoder_forward.1} parent=1 // pred_region
      _
    $region9: #{lstm_encoder_forward.1} parent=1 // pred_fallthru
      _
    // Predicated region
    $region10: #{lstm_encoder_forward.1} parent=1 // pred_check
      _
    $region11: #{lstm_encoder_forward.1} parent=1 // pred_check_branch
      %16 = sbr.rel (0) target = $region13
    $region12: #{lstm_encoder_forward.1} parent=1 // pred_region
      %s18 = ssub.s32 4096, 4096
      %19 = vsyncadd [#allocation4], %s18
      %s20 = sshll.u32 [#allocation3], 4
      %s21 = int_to_ptr.vmem [resolvable:$true] %s20
      %26 = dma.hbm_to_vmem [thread:$0]  %s2, 4096, %s21, [#allocation4], 256, 256, 16
    $region13: #{lstm_encoder_forward.1} parent=1 // pred_fallthru
      _
    // Predicated region
    $region14: #{lstm_encoder_forward.1} parent=1 // pred_check
      _
    $region15: #{lstm_encoder_forward.1} parent=1 // pred_check_branch
      %28 = sbr.rel (0) target = $region17
    $region16: #{lstm_encoder_forward.1} parent=1 // pred_region
      _
    $region17: #{lstm_encoder_forward.1} parent=1 // pred_fallthru
      _
    // Predicated region
    $region18: #{lstm_encoder_forward.1} parent=1 // pred_check
      _
    $region19: #{lstm_encoder_forward.1} parent=1 // pred_check_branch
      %30 = sbr.rel (0) target = $region21
    $region20: #{lstm_encoder_forward.1} parent=1 // pred_region
      %31 = dma.done [#allocation4], 4096
    $region21: #{lstm_encoder_forward.1} parent=1 // pred_fallthru
      _
    %v33 = vld [vmem:[%s1] sm:$0xff]
    %v34 = vld [vmem:[#allocation3] sm:$0xff]
    %v35 = vld [vmem:[#allocation3 + $0x8] sm:$0xff]
    %v36 = vld [vmem:[#allocation3 + $0x10] sm:$0xff]
    %v37 = vld [vmem:[#allocation3 + $0x18] sm:$0xff]
    %v38 = vld [vmem:[#allocation3 + $0x20] sm:$0xff]
    %v39 = vld [vmem:[#allocation3 + $0x28] sm:$0xff]
    %v40 = vld [vmem:[#allocation3 + $0x30] sm:$0xff]
    %v41 = vld [vmem:[#allocation3 + $0x38] sm:$0xff]
    %v42 = vld [vmem:[#allocation3 + $0x40] sm:$0xff]
    %v43 = vld [vmem:[#allocation3 + $0x48] sm:$0xff]
    %v44 = vld [vmem:[#allocation3 + $0x50] sm:$0xff]
    %v45 = vld [vmem:[#allocation3 + $0x58] sm:$0xff]
    %v46 = vld [vmem:[#allocation3 + $0x60] sm:$0xff]
    %v47 = vld [vmem:[#allocation3 + $0x68] sm:$0xff]
    %v48 = vld [vmem:[#allocation3 + $0x70] sm:$0xff]
    %v49 = vld [vmem:[#allocation3 + $0x78] sm:$0xff]
    %v50 = vld [vmem:[#allocation3 + $0x80] sm:$0xff]
    %v51 = vld [vmem:[#allocation3 + $0x88] sm:$0xff]
    %v52 = vld [vmem:[#allocation3 + $0x90] sm:$0xff]
    %v53 = vld [vmem:[#allocation3 + $0x98] sm:$0xff]
    %v54 = vld [vmem:[#allocation3 + $0xa0] sm:$0xff]
    %v55 = vld [vmem:[#allocation3 + $0xa8] sm:$0xff]
    %v56 = vld [vmem:[#allocation3 + $0xb0] sm:$0xff]
    %v57 = vld [vmem:[#allocation3 + $0xb8] sm:$0xff]
    %v58 = vld [vmem:[#allocation3 + $0xc0] sm:$0xff]
    %v59 = vld [vmem:[#allocation3 + $0xc8] sm:$0xff]
    %v60 = vld [vmem:[#allocation3 + $0xd0] sm:$0xff]
    %v61 = vld [vmem:[#allocation3 + $0xd8] sm:$0xff]
    %v62 = vld [vmem:[#allocation3 + $0xe0] sm:$0xff]
    %v63 = vld [vmem:[#allocation3 + $0xe8] sm:$0xff]
    %v64 = vld [vmem:[#allocation3 + $0xf0] sm:$0xff]
    %v65 = vld [vmem:[#allocation3 + $0xf8] sm:$0xff]
    %v66 = vld [vmem:[%s3] sm:$0xf]
    %v67 = vld [vmem:[%s0] sm:$0xff]
    %v68 = vld [vmem:[%s0 + $0x8] sm:$0xff]
    %v69 = vpack.c.bf16 %v68, %v67
    %v71 = vlaneseq
    %v72 = vshrl.u32 %v71, 7
    %v73 = vsub.s32 0, %v72
    %v74 = vrot.slane %v66, %v73
    %v75 = vlaneseq
    %v76 = vshrl.u32 %v75, 7
    %v77 = vsub.s32 1, %v76
    %v78 = vrot.slane %v66, %v77
    %v79 = vlaneseq
    %v80 = vshrl.u32 %v79, 7
    %v81 = vsub.s32 2, %v80
    %v82 = vrot.slane %v66, %v81
    %v83 = vlaneseq
    %v84 = vshrl.u32 %v83, 7
    %v85 = vsub.s32 3, %v84
    %v86 = vrot.slane %v66, %v85
    %v92 = vcombine.high %v33, %v33
    %v94 = vunpack.c.l.s4 1983009808
    %v95 = vunpack.c.0.s8 %v94
    %v96 = vlaneseq
    %v97 = vshrl.u32 %v96, 7
    %v98 = vsub.s32 %v95, %v97
    %v99 = vrot.slane %v33, %v98
    %v101 = vunpack.c.l.s4 1983009808
    %v102 = vunpack.c.0.s8 %v101
    %v103 = vlaneseq
    %v104 = vshrl.u32 %v103, 7
    %v105 = vsub.s32 %v102, %v104
    %v106 = vrot.slane %v92, %v105
    %v107 = vcombine.high %v99, %v99
    %v108 = vcombine.high %v106, %v106
    %vm109 = vcmask 31744
    %v111 = vsel %vm109, %v69, 0
    %vm113 = vcmask 1041408
    %v115 = vsel %vm113, %v99, 0
    %v118 = vsel %vm113, %v107, 0
    %v121 = vsel %vm113, %v106, 0
    %v124 = vsel %vm113, %v108, 0
    %126 = vmatprep.subr.bf16.mxu0 %v118
    %127 = vmatpush1.bf16.msra.mxu0 %v115
    %128 = vmatprep.subr.bf16.mxu0 0
    %129 = vmatpush1.bf16.msra.mxu0 0
    %130 = vmatprep.subr.bf16.mxu0 0
    %131 = vmatpush1.bf16.msra.mxu0 0
    %132 = vmatprep.subr.bf16.mxu0 0
    %133 = vmatpush1.bf16.msra.mxu0 0
    %134 = vmatprep.subr.bf16.mxu0 0
    %135 = vmatpush1.bf16.msra.mxu0 0
    %136 = vmatprep.subr.bf16.mxu0 0
    %137 = vmatpush1.bf16.msra.mxu0 0
    %138 = vmatprep.subr.bf16.mxu0 0
    %139 = vmatpush1.bf16.msra.mxu0 0
    %140 = vmatprep.subr.bf16.mxu0 0
    %141 = vmatpush1.bf16.msra.mxu0 0
    %142 = vmatprep.subr.bf16.mxu0 0
    %143 = vmatpush1.bf16.msra.mxu0 0
    %144 = vmatprep.subr.bf16.mxu0 0
    %145 = vmatpush1.bf16.msra.mxu0 0
    %146 = vmatprep.subr.bf16.mxu0 0
    %147 = vmatpush1.bf16.msra.mxu0 0
    %148 = vmatprep.subr.bf16.mxu0 0
    %149 = vmatpush1.bf16.msra.mxu0 0
    %150 = vmatprep.subr.bf16.mxu0 0
    %151 = vmatpush1.bf16.msra.mxu0 0
    %152 = vmatprep.subr.bf16.mxu0 0
    %153 = vmatpush1.bf16.msra.mxu0 0
    %154 = vmatprep.subr.bf16.mxu0 0
    %155 = vmatpush1.bf16.msra.mxu0 0
    %156 = vmatprep.subr.bf16.mxu0 0
    %157 = vmatpush1.bf16.msra.mxu0 0
    %158 = vmatprep.mubr.bf16.mxu0 0
    %159 = vmatmul.mubr.bf16.gmra.mrb[0].mxu0 %v111
    %v160 = vpop.f32.mrb[0].mxu0
    %v161 = vadd.f32 %v74, %v160
    %v162 = vpop.f32.mrb[0].mxu0
    %v163 = vadd.f32 %v78, %v162
    %v164 = vpop.f32.mrb[0].mxu0
    %v165 = vadd.f32 %v74, %v164
    %v166 = vpop.f32.mrb[0].mxu0
    %v167 = vadd.f32 %v78, %v166
    %168 = vdwg.mxu0
    %169 = vmatprep.subr.bf16.mxu0 %v124
    %170 = vmatpush1.bf16.msra.mxu0 %v121
    %171 = vmatprep.subr.bf16.mxu0 0
    %172 = vmatpush1.bf16.msra.mxu0 0
    %173 = vmatprep.subr.bf16.mxu0 0
    %174 = vmatpush1.bf16.msra.mxu0 0
    %175 = vmatprep.subr.bf16.mxu0 0
    %176 = vmatpush1.bf16.msra.mxu0 0
    %177 = vmatprep.subr.bf16.mxu0 0
    %178 = vmatpush1.bf16.msra.mxu0 0
    %179 = vmatprep.subr.bf16.mxu0 0
    %180 = vmatpush1.bf16.msra.mxu0 0
    %181 = vmatprep.subr.bf16.mxu0 0
    %182 = vmatpush1.bf16.msra.mxu0 0
    %183 = vmatprep.subr.bf16.mxu0 0
    %184 = vmatpush1.bf16.msra.mxu0 0
    %185 = vmatprep.subr.bf16.mxu0 0
    %186 = vmatpush1.bf16.msra.mxu0 0
    %187 = vmatprep.subr.bf16.mxu0 0
    %188 = vmatpush1.bf16.msra.mxu0 0
    %189 = vmatprep.subr.bf16.mxu0 0
    %190 = vmatpush1.bf16.msra.mxu0 0
    %191 = vmatprep.subr.bf16.mxu0 0
    %192 = vmatpush1.bf16.msra.mxu0 0
    %193 = vmatprep.subr.bf16.mxu0 0
    %194 = vmatpush1.bf16.msra.mxu0 0
    %195 = vmatprep.subr.bf16.mxu0 0
    %196 = vmatpush1.bf16.msra.mxu0 0
    %197 = vmatprep.subr.bf16.mxu0 0
    %198 = vmatpush1.bf16.msra.mxu0 0
    %199 = vmatprep.subr.bf16.mxu0 0
    %200 = vmatpush1.bf16.msra.mxu0 0
    %201 = vmatprep.mubr.bf16.mxu0 0
    %202 = vmatmul.mubr.bf16.gmra.mrb[0].mxu0 %v111
    %v203 = vpop.f32.mrb[0].mxu0
    %v204 = vadd.f32 %v82, %v203
    %v205 = vpop.f32.mrb[0].mxu0
    %v206 = vadd.f32 %v86, %v205
    %v207 = vpop.f32.mrb[0].mxu0
    %v208 = vadd.f32 %v82, %v207
    %v209 = vpop.f32.mrb[0].mxu0
    %v210 = vadd.f32 %v86, %v209
    %211 = vdwg.mxu0
    %212 = vst [vmem:[#allocation2] sm:$0xff] %v161
    %213 = vst [vmem:[#allocation2 + $0x8] sm:$0xff] %v163
    %214 = vst [vmem:[#allocation2 + $0x10] sm:$0xff] %v204
    %215 = vst [vmem:[#allocation2 + $0x18] sm:$0xff] %v206
    %216 = vst [vmem:[#allocation2 + $0x20] sm:$0xff] %v165
    %217 = vst [vmem:[#allocation2 + $0x28] sm:$0xff] %v167
    %218 = vst [vmem:[#allocation2 + $0x30] sm:$0xff] %v208
    %219 = vst [vmem:[#allocation2 + $0x38] sm:$0xff] %v210
    %v220 = vld [vmem:[#allocation2] sm:$0x3]
    %v221 = vld [vmem:[#allocation2 + $0x8] sm:$0x3]
    %v222 = vld [vmem:[#allocation2 + $0x10] sm:$0x3]
    %v223 = vld [vmem:[#allocation2 + $0x18] sm:$0x3]
    %v256 = vunpack.c.l.b16 %v34
    %v257 = vunpack.c.h.b16 %v34
    %v258 = vunpack.c.l.b16 %v35
    %v259 = vunpack.c.h.b16 %v35
    %v260 = vunpack.c.l.b16 %v36
    %v261 = vunpack.c.h.b16 %v36
    %v262 = vunpack.c.l.b16 %v37
    %v263 = vunpack.c.h.b16 %v37
    %v264 = vunpack.c.l.b16 %v38
    %v265 = vunpack.c.h.b16 %v38
    %v266 = vunpack.c.l.b16 %v39
    %v267 = vunpack.c.h.b16 %v39
    %v268 = vunpack.c.l.b16 %v40
    %v269 = vunpack.c.h.b16 %v40
    %v270 = vunpack.c.l.b16 %v41
    %v271 = vunpack.c.h.b16 %v41
    %v272 = vunpack.c.l.b16 %v42
    %v273 = vunpack.c.h.b16 %v42
    %v274 = vunpack.c.l.b16 %v43
    %v275 = vunpack.c.h.b16 %v43
    %v276 = vunpack.c.l.b16 %v44
    %v277 = vunpack.c.h.b16 %v44
    %v278 = vunpack.c.l.b16 %v45
    %v279 = vunpack.c.h.b16 %v45
    %v280 = vunpack.c.l.b16 %v46
    %v281 = vunpack.c.h.b16 %v46
    %v282 = vunpack.c.l.b16 %v47
    %v283 = vunpack.c.h.b16 %v47
    %v284 = vunpack.c.l.b16 %v48
    %v285 = vunpack.c.h.b16 %v48
    %v286 = vunpack.c.l.b16 %v49
    %v287 = vunpack.c.h.b16 %v49
    %v288 = vunpack.c.l.b16 %v50
    %v289 = vunpack.c.h.b16 %v50
    %v290 = vunpack.c.l.b16 %v51
    %v291 = vunpack.c.h.b16 %v51
    %v292 = vunpack.c.l.b16 %v52
    %v293 = vunpack.c.h.b16 %v52
    %v294 = vunpack.c.l.b16 %v53
    %v295 = vunpack.c.h.b16 %v53
    %v296 = vunpack.c.l.b16 %v54
    %v297 = vunpack.c.h.b16 %v54
    %v298 = vunpack.c.l.b16 %v55
    %v299 = vunpack.c.h.b16 %v55
    %v300 = vunpack.c.l.b16 %v56
    %v301 = vunpack.c.h.b16 %v56
    %v302 = vunpack.c.l.b16 %v57
    %v303 = vunpack.c.h.b16 %v57
    %v304 = vunpack.c.l.b16 %v58
    %v305 = vunpack.c.h.b16 %v58
    %v306 = vunpack.c.l.b16 %v59
    %v307 = vunpack.c.h.b16 %v59
    %v308 = vunpack.c.l.b16 %v60
    %v309 = vunpack.c.h.b16 %v60
    %v310 = vunpack.c.l.b16 %v61
    %v311 = vunpack.c.h.b16 %v61
    %v312 = vunpack.c.l.b16 %v62
    %v313 = vunpack.c.h.b16 %v62
    %v314 = vunpack.c.l.b16 %v63
    %v315 = vunpack.c.h.b16 %v63
    %v316 = vunpack.c.l.b16 %v64
    %v317 = vunpack.c.h.b16 %v64
    %v318 = vunpack.c.l.b16 %v65
    %v319 = vunpack.c.h.b16 %v65
    %v320 = vpack.c.b16 %v260, %v256
    %v321 = vpack.c.b16 %v261, %v257
    %v322 = vpack.c.b16 %v262, %v258
    %v323 = vpack.c.b16 %v263, %v259
    %v324 = vpack.c.b16 %v268, %v264
    %v325 = vpack.c.b16 %v269, %v265
    %v326 = vpack.c.b16 %v270, %v266
    %v327 = vpack.c.b16 %v271, %v267
    %v328 = vpack.c.b16 %v276, %v272
    %v329 = vpack.c.b16 %v277, %v273
    %v330 = vpack.c.b16 %v278, %v274
    %v331 = vpack.c.b16 %v279, %v275
    %v332 = vpack.c.b16 %v284, %v280
    %v333 = vpack.c.b16 %v285, %v281
    %v334 = vpack.c.b16 %v286, %v282
    %v335 = vpack.c.b16 %v287, %v283
    %v336 = vpack.c.b16 %v292, %v288
    %v337 = vpack.c.b16 %v293, %v289
    %v338 = vpack.c.b16 %v294, %v290
    %v339 = vpack.c.b16 %v295, %v291
    %v340 = vpack.c.b16 %v300, %v296
    %v341 = vpack.c.b16 %v301, %v297
    %v342 = vpack.c.b16 %v302, %v298
    %v343 = vpack.c.b16 %v303, %v299
    %v344 = vpack.c.b16 %v308, %v304
    %v345 = vpack.c.b16 %v309, %v305
    %v346 = vpack.c.b16 %v310, %v306
    %v347 = vpack.c.b16 %v311, %v307
    %v348 = vpack.c.b16 %v316, %v312
    %v349 = vpack.c.b16 %v317, %v313
    %v350 = vpack.c.b16 %v318, %v314
    %v351 = vpack.c.b16 %v319, %v315
    %384 = vmatprep.subr.bf16.mxu0 %v321
    %385 = vmatpush1.bf16.msra.mxu0 %v320
    %386 = vmatprep.subr.bf16.mxu0 %v325
    %387 = vmatpush1.bf16.msra.mxu0 %v324
    %388 = vmatprep.subr.bf16.mxu0 %v329
    %389 = vmatpush1.bf16.msra.mxu0 %v328
    %390 = vmatprep.subr.bf16.mxu0 %v333
    %391 = vmatpush1.bf16.msra.mxu0 %v332
    %392 = vmatprep.subr.bf16.mxu0 %v337
    %393 = vmatpush1.bf16.msra.mxu0 %v336
    %394 = vmatprep.subr.bf16.mxu0 %v341
    %395 = vmatpush1.bf16.msra.mxu0 %v340
    %396 = vmatprep.subr.bf16.mxu0 %v345
    %397 = vmatpush1.bf16.msra.mxu0 %v344
    %398 = vmatprep.subr.bf16.mxu0 %v349
    %399 = vmatpush1.bf16.msra.mxu0 %v348
    %400 = vmatprep.subr.bf16.mxu0 0
    %401 = vmatpush1.bf16.msra.mxu0 0
    %402 = vmatprep.subr.bf16.mxu0 0
    %403 = vmatpush1.bf16.msra.mxu0 0
    %404 = vmatprep.subr.bf16.mxu0 0
    %405 = vmatpush1.bf16.msra.mxu0 0
    %406 = vmatprep.subr.bf16.mxu0 0
    %407 = vmatpush1.bf16.msra.mxu0 0
    %408 = vmatprep.subr.bf16.mxu0 0
    %409 = vmatpush1.bf16.msra.mxu0 0
    %410 = vmatprep.subr.bf16.mxu0 0
    %411 = vmatpush1.bf16.msra.mxu0 0
    %412 = vmatprep.subr.bf16.mxu0 0
    %413 = vmatpush1.bf16.msra.mxu0 0
    %414 = vmatprep.subr.bf16.mxu0 0
    %415 = vmatpush1.bf16.msra.mxu0 0
    %416 = vmatprep.mubr.bf16.mxu0 0
    %417 = vmatmul.mubr.bf16.gmra.mrb[0].mxu0 0
    %v418 = vpop.f32.mrb[0].mxu0
    %v419 = vadd.f32 0.0, %v418
    %v420 = vpop.f32.mrb[0].mxu0
    %v421 = vadd.f32 0.0, %v420
    %v422 = vpop.f32.mrb[0].mxu0
    %v423 = vpop.f32.mrb[0].mxu0
    %424 = vdwg.mxu0
    %425 = vmatprep.subr.bf16.mxu0 %v323
    %426 = vmatpush1.bf16.msra.mxu0 %v322
    %427 = vmatprep.subr.bf16.mxu0 %v327
    %428 = vmatpush1.bf16.msra.mxu0 %v326
    %429 = vmatprep.subr.bf16.mxu0 %v331
    %430 = vmatpush1.bf16.msra.mxu0 %v330
    %431 = vmatprep.subr.bf16.mxu0 %v335
    %432 = vmatpush1.bf16.msra.mxu0 %v334
    %433 = vmatprep.subr.bf16.mxu0 %v339
    %434 = vmatpush1.bf16.msra.mxu0 %v338
    %435 = vmatprep.subr.bf16.mxu0 %v343
    %436 = vmatpush1.bf16.msra.mxu0 %v342
    %437 = vmatprep.subr.bf16.mxu0 %v347
    %438 = vmatpush1.bf16.msra.mxu0 %v346
    %439 = vmatprep.subr.bf16.mxu0 %v351
    %440 = vmatpush1.bf16.msra.mxu0 %v350
    %441 = vmatprep.subr.bf16.mxu0 0
    %442 = vmatpush1.bf16.msra.mxu0 0
    %443 = vmatprep.subr.bf16.mxu0 0
    %444 = vmatpush1.bf16.msra.mxu0 0
    %445 = vmatprep.subr.bf16.mxu0 0
    %446 = vmatpush1.bf16.msra.mxu0 0
    %447 = vmatprep.subr.bf16.mxu0 0
    %448 = vmatpush1.bf16.msra.mxu0 0
    %449 = vmatprep.subr.bf16.mxu0 0
    %450 = vmatpush1.bf16.msra.mxu0 0
    %451 = vmatprep.subr.bf16.mxu0 0
    %452 = vmatpush1.bf16.msra.mxu0 0
    %453 = vmatprep.subr.bf16.mxu0 0
    %454 = vmatpush1.bf16.msra.mxu0 0
    %455 = vmatprep.subr.bf16.mxu0 0
    %456 = vmatpush1.bf16.msra.mxu0 0
    %457 = vmatprep.mubr.bf16.mxu0 0
    %458 = vmatmul.mubr.bf16.gmra.mrb[0].mxu0 0
    %v459 = vpop.f32.mrb[0].mxu0
    %v460 = vadd.f32 0.0, %v459
    %v461 = vpop.f32.mrb[0].mxu0
    %v462 = vadd.f32 0.0, %v461
    %v463 = vpop.f32.mrb[0].mxu0
    %v464 = vpop.f32.mrb[0].mxu0
    %465 = vdwg.mxu0
    %v466 = vadd.f32 %v220, %v419
    %v467 = vadd.f32 %v221, %v421
    %v468 = vadd.f32 %v222, %v460
    %v469 = vadd.f32 %v223, %v462
    %v470 = vxor.u32 %v466, 2147483648
    %v471 = vmul.f32 %v470, 1.442695
    %v472 = vpow.pop %v471
    %v473 = vadd.f32 %v472, 1.0
    %v474 = vrcp.pop %v473
    %v475 = vmul.f32 1.0, %v474
    %v476 = vxor.u32 %v467, 2147483648
    %v477 = vmul.f32 %v476, 1.442695
    %v478 = vpow.pop %v477
    %v479 = vadd.f32 %v478, 1.0
    %v480 = vrcp.pop %v479
    %v481 = vmul.f32 1.0, %v480
    %v482 = vtanh.pop %v468
    %v483 = vxor.u32 %v469, 2147483648
    %v484 = vmul.f32 %v483, 1.442695
    %v485 = vpow.pop %v484
    %v486 = vadd.f32 %v485, 1.0
    %v487 = vrcp.pop %v486
    %v488 = vmul.f32 1.0, %v487
    %v489 = vmul.f32 %v481, 0.0
    %v490 = vmul.f32 %v475, %v482
    %v491 = vadd.f32 %v489, %v490
    %v492 = vtanh.pop %v491
    %v493 = vmul.f32 %v488, %v492
    %v494 = vld [vmem:[#allocation2] sm:$0xc]
    %v495 = vld [vmem:[#allocation2 + $0x8] sm:$0xc]
    %v496 = vld [vmem:[#allocation2 + $0x10] sm:$0xc]
    %v497 = vld [vmem:[#allocation2 + $0x18] sm:$0xc]
    %v498 = vpack.c.bf16 %v493, %v493
    %499 = vmatprep.subr.bf16.mxu0 %v321
    %500 = vmatpush1.bf16.msra.mxu0 %v320
    %501 = vmatprep.subr.bf16.mxu0 %v325
    %502 = vmatpush1.bf16.msra.mxu0 %v324
    %503 = vmatprep.subr.bf16.mxu0 %v329
    %504 = vmatpush1.bf16.msra.mxu0 %v328
    %505 = vmatprep.subr.bf16.mxu0 %v333
    %506 = vmatpush1.bf16.msra.mxu0 %v332
    %507 = vmatprep.subr.bf16.mxu0 %v337
    %508 = vmatpush1.bf16.msra.mxu0 %v336
    %509 = vmatprep.subr.bf16.mxu0 %v341
    %510 = vmatpush1.bf16.msra.mxu0 %v340
    %511 = vmatprep.subr.bf16.mxu0 %v345
    %512 = vmatpush1.bf16.msra.mxu0 %v344
    %513 = vmatprep.subr.bf16.mxu0 %v349
    %514 = vmatpush1.bf16.msra.mxu0 %v348
    %515 = vmatprep.subr.bf16.mxu0 0
    %516 = vmatpush1.bf16.msra.mxu0 0
    %517 = vmatprep.subr.bf16.mxu0 0
    %518 = vmatpush1.bf16.msra.mxu0 0
    %519 = vmatprep.subr.bf16.mxu0 0
    %520 = vmatpush1.bf16.msra.mxu0 0
    %521 = vmatprep.subr.bf16.mxu0 0
    %522 = vmatpush1.bf16.msra.mxu0 0
    %523 = vmatprep.subr.bf16.mxu0 0
    %524 = vmatpush1.bf16.msra.mxu0 0
    %525 = vmatprep.subr.bf16.mxu0 0
    %526 = vmatpush1.bf16.msra.mxu0 0
    %527 = vmatprep.subr.bf16.mxu0 0
    %528 = vmatpush1.bf16.msra.mxu0 0
    %529 = vmatprep.subr.bf16.mxu0 0
    %530 = vmatpush1.bf16.msra.mxu0 0
    %531 = vmatprep.mubr.bf16.mxu0 0
    %532 = vmatmul.mubr.bf16.gmra.mrb[0].mxu0 %v498
    %v533 = vpop.f32.mrb[0].mxu0
    %v534 = vadd.f32 0.0, %v533
    %v535 = vpop.f32.mrb[0].mxu0
    %v536 = vadd.f32 0.0, %v535
    %v537 = vpop.f32.mrb[0].mxu0
    %v538 = vpop.f32.mrb[0].mxu0
    %539 = vdwg.mxu0
    %540 = vmatprep.subr.bf16.mxu0 %v323
    %541 = vmatpush1.bf16.msra.mxu0 %v322
    %542 = vmatprep.subr.bf16.mxu0 %v327
    %543 = vmatpush1.bf16.msra.mxu0 %v326
    %544 = vmatprep.subr.bf16.mxu0 %v331
    %545 = vmatpush1.bf16.msra.mxu0 %v330
    %546 = vmatprep.subr.bf16.mxu0 %v335
    %547 = vmatpush1.bf16.msra.mxu0 %v334
    %548 = vmatprep.subr.bf16.mxu0 %v339
    %549 = vmatpush1.bf16.msra.mxu0 %v338
    %550 = vmatprep.subr.bf16.mxu0 %v343
    %551 = vmatpush1.bf16.msra.mxu0 %v342
    %552 = vmatprep.subr.bf16.mxu0 %v347
    %553 = vmatpush1.bf16.msra.mxu0 %v346
    %554 = vmatprep.subr.bf16.mxu0 %v351
    %555 = vmatpush1.bf16.msra.mxu0 %v350
    %556 = vmatprep.subr.bf16.mxu0 0
    %557 = vmatpush1.bf16.msra.mxu0 0
    %558 = vmatprep.subr.bf16.mxu0 0
    %559 = vmatpush1.bf16.msra.mxu0 0
    %560 = vmatprep.subr.bf16.mxu0 0
    %561 = vmatpush1.bf16.msra.mxu0 0
    %562 = vmatprep.subr.bf16.mxu0 0
    %563 = vmatpush1.bf16.msra.mxu0 0
    %564 = vmatprep.subr.bf16.mxu0 0
    %565 = vmatpush1.bf16.msra.mxu0 0
    %566 = vmatprep.subr.bf16.mxu0 0
    %567 = vmatpush1.bf16.msra.mxu0 0
    %568 = vmatprep.subr.bf16.mxu0 0
    %569 = vmatpush1.bf16.msra.mxu0 0
    %570 = vmatprep.subr.bf16.mxu0 0
    %571 = vmatpush1.bf16.msra.mxu0 0
    %572 = vmatprep.mubr.bf16.mxu0 0
    %573 = vmatmul.mubr.bf16.gmra.mrb[0].mxu0 %v498
    %v574 = vpop.f32.mrb[0].mxu0
    %v575 = vadd.f32 0.0, %v574
    %v576 = vpop.f32.mrb[0].mxu0
    %v577 = vadd.f32 0.0, %v576
    %v578 = vpop.f32.mrb[0].mxu0
    %v579 = vpop.f32.mrb[0].mxu0
    %580 = vdwg.mxu0
    %v585 = vrot.slane %v534, 6
    %v586 = vrot.slane %v536, 6
    %v587 = vrot.slane %v575, 6
    %v588 = vrot.slane %v577, 6
    %v593 = vadd.f32 %v494, %v585
    %v594 = vadd.f32 %v495, %v586
    %v595 = vadd.f32 %v496, %v587
    %v596 = vadd.f32 %v497, %v588
    %v597 = vxor.u32 %v593, 2147483648
    %v598 = vmul.f32 %v597, 1.442695
    %v599 = vpow.pop %v598
    %v600 = vadd.f32 %v599, 1.0
    %v601 = vrcp.pop %v600
    %v602 = vmul.f32 1.0, %v601
    %v603 = vxor.u32 %v594, 2147483648
    %v604 = vmul.f32 %v603, 1.442695
    %v605 = vpow.pop %v604
    %v606 = vadd.f32 %v605, 1.0
    %v607 = vrcp.pop %v606
    %v608 = vmul.f32 1.0, %v607
    %v609 = vtanh.pop %v595
    %v610 = vxor.u32 %v596, 2147483648
    %v611 = vmul.f32 %v610, 1.442695
    %v612 = vpow.pop %v611
    %v613 = vadd.f32 %v612, 1.0
    %v614 = vrcp.pop %v613
    %v615 = vmul.f32 1.0, %v614
    %v617 = vrot.slane %v491, 6
    %v619 = vmul.f32 %v608, %v617
    %v620 = vmul.f32 %v602, %v609
    %v621 = vadd.f32 %v619, %v620
    %v622 = vtanh.pop %v621
    %v623 = vmul.f32 %v615, %v622
    %v624 = vld [vmem:[#allocation2] sm:$0x30]
    %v625 = vld [vmem:[#allocation2 + $0x8] sm:$0x30]
    %v626 = vld [vmem:[#allocation2 + $0x10] sm:$0x30]
    %v627 = vld [vmem:[#allocation2 + $0x18] sm:$0x30]
    %v628 = vpack.c.bf16 %v623, %v623
    %v630 = vrot.slane %v628, 1
    %632 = vmatprep.subr.bf16.mxu0 %v321
    %633 = vmatpush1.bf16.msra.mxu0 %v320
    %634 = vmatprep.subr.bf16.mxu0 %v325
    %635 = vmatpush1.bf16.msra.mxu0 %v324
    %636 = vmatprep.subr.bf16.mxu0 %v329
    %637 = vmatpush1.bf16.msra.mxu0 %v328
    %638 = vmatprep.subr.bf16.mxu0 %v333
    %639 = vmatpush1.bf16.msra.mxu0 %v332
    %640 = vmatprep.subr.bf16.mxu0 %v337
    %641 = vmatpush1.bf16.msra.mxu0 %v336
    %642 = vmatprep.subr.bf16.mxu0 %v341
    %643 = vmatpush1.bf16.msra.mxu0 %v340
    %644 = vmatprep.subr.bf16.mxu0 %v345
    %645 = vmatpush1.bf16.msra.mxu0 %v344
    %646 = vmatprep.subr.bf16.mxu0 %v349
    %647 = vmatpush1.bf16.msra.mxu0 %v348
    %648 = vmatprep.subr.bf16.mxu0 0
    %649 = vmatpush1.bf16.msra.mxu0 0
    %650 = vmatprep.subr.bf16.mxu0 0
    %651 = vmatpush1.bf16.msra.mxu0 0
    %652 = vmatprep.subr.bf16.mxu0 0
    %653 = vmatpush1.bf16.msra.mxu0 0
    %654 = vmatprep.subr.bf16.mxu0 0
    %655 = vmatpush1.bf16.msra.mxu0 0
    %656 = vmatprep.subr.bf16.mxu0 0
    %657 = vmatpush1.bf16.msra.mxu0 0
    %658 = vmatprep.subr.bf16.mxu0 0
    %659 = vmatpush1.bf16.msra.mxu0 0
    %660 = vmatprep.subr.bf16.mxu0 0
    %661 = vmatpush1.bf16.msra.mxu0 0
    %662 = vmatprep.subr.bf16.mxu0 0
    %663 = vmatpush1.bf16.msra.mxu0 0
    %664 = vmatprep.mubr.bf16.mxu0 0
    %665 = vmatmul.mubr.bf16.gmra.mrb[0].mxu0 %v630
    %v666 = vpop.f32.mrb[0].mxu0
    %v667 = vadd.f32 0.0, %v666
    %v668 = vpop.f32.mrb[0].mxu0
    %v669 = vadd.f32 0.0, %v668
    %v670 = vpop.f32.mrb[0].mxu0
    %v671 = vpop.f32.mrb[0].mxu0
    %672 = vdwg.mxu0
    %673 = vmatprep.subr.bf16.mxu0 %v323
    %674 = vmatpush1.bf16.msra.mxu0 %v322
    %675 = vmatprep.subr.bf16.mxu0 %v327
    %676 = vmatpush1.bf16.msra.mxu0 %v326
    %677 = vmatprep.subr.bf16.mxu0 %v331
    %678 = vmatpush1.bf16.msra.mxu0 %v330
    %679 = vmatprep.subr.bf16.mxu0 %v335
    %680 = vmatpush1.bf16.msra.mxu0 %v334
    %681 = vmatprep.subr.bf16.mxu0 %v339
    %682 = vmatpush1.bf16.msra.mxu0 %v338
    %683 = vmatprep.subr.bf16.mxu0 %v343
    %684 = vmatpush1.bf16.msra.mxu0 %v342
    %685 = vmatprep.subr.bf16.mxu0 %v347
    %686 = vmatpush1.bf16.msra.mxu0 %v346
    %687 = vmatprep.subr.bf16.mxu0 %v351
    %688 = vmatpush1.bf16.msra.mxu0 %v350
    %689 = vmatprep.subr.bf16.mxu0 0
    %690 = vmatpush1.bf16.msra.mxu0 0
    %691 = vmatprep.subr.bf16.mxu0 0
    %692 = vmatpush1.bf16.msra.mxu0 0
    %693 = vmatprep.subr.bf16.mxu0 0
    %694 = vmatpush1.bf16.msra.mxu0 0
    %695 = vmatprep.subr.bf16.mxu0 0
    %696 = vmatpush1.bf16.msra.mxu0 0
    %697 = vmatprep.subr.bf16.mxu0 0
    %698 = vmatpush1.bf16.msra.mxu0 0
    %699 = vmatprep.subr.bf16.mxu0 0
    %700 = vmatpush1.bf16.msra.mxu0 0
    %701 = vmatprep.subr.bf16.mxu0 0
    %702 = vmatpush1.bf16.msra.mxu0 0
    %703 = vmatprep.subr.bf16.mxu0 0
    %704 = vmatpush1.bf16.msra.mxu0 0
    %705 = vmatprep.mubr.bf16.mxu0 0
    %706 = vmatmul.mubr.bf16.gmra.mrb[0].mxu0 %v630
    %v707 = vpop.f32.mrb[0].mxu0
    %v708 = vadd.f32 0.0, %v707
    %v709 = vpop.f32.mrb[0].mxu0
    %v710 = vadd.f32 0.0, %v709
    %v711 = vpop.f32.mrb[0].mxu0
    %v712 = vpop.f32.mrb[0].mxu0
    %713 = vdwg.mxu0
    %v718 = vrot.slane %v667, 4
    %v719 = vrot.slane %v669, 4
    %v720 = vrot.slane %v708, 4
    %v721 = vrot.slane %v710, 4
    %v726 = vadd.f32 %v624, %v718
    %v727 = vadd.f32 %v625, %v719
    %v728 = vadd.f32 %v626, %v720
    %v729 = vadd.f32 %v627, %v721
    %v730 = vxor.u32 %v726, 2147483648
    %v731 = vmul.f32 %v730, 1.442695
    %v732 = vpow.pop %v731
    %v733 = vadd.f32 %v732, 1.0
    %v734 = vrcp.pop %v733
    %v735 = vmul.f32 1.0, %v734
    %v736 = vxor.u32 %v727, 2147483648
    %v737 = vmul.f32 %v736, 1.442695
    %v738 = vpow.pop %v737
    %v739 = vadd.f32 %v738, 1.0
    %v740 = vrcp.pop %v739
    %v741 = vmul.f32 1.0, %v740
    %v742 = vtanh.pop %v728
    %v743 = vxor.u32 %v729, 2147483648
    %v744 = vmul.f32 %v743, 1.442695
    %v745 = vpow.pop %v744
    %v746 = vadd.f32 %v745, 1.0
    %v747 = vrcp.pop %v746
    %v748 = vmul.f32 1.0, %v747
    %v750 = vrot.slane %v621, 6
    %v752 = vmul.f32 %v741, %v750
    %v753 = vmul.f32 %v735, %v742
    %v754 = vadd.f32 %v752, %v753
    %v755 = vtanh.pop %v754
    %v756 = vmul.f32 %v748, %v755
    %v757 = vld [vmem:[#allocation2] sm:$0xc0]
    %v758 = vld [vmem:[#allocation2 + $0x8] sm:$0xc0]
    %v759 = vld [vmem:[#allocation2 + $0x10] sm:$0xc0]
    %v760 = vld [vmem:[#allocation2 + $0x18] sm:$0xc0]
    %v761 = vpack.c.bf16 %v756, %v756
    %v763 = vrot.slane %v761, 2
    %765 = vmatprep.subr.bf16.mxu0 %v321
    %766 = vmatpush1.bf16.msra.mxu0 %v320
    %767 = vmatprep.subr.bf16.mxu0 %v325
    %768 = vmatpush1.bf16.msra.mxu0 %v324
    %769 = vmatprep.subr.bf16.mxu0 %v329
    %770 = vmatpush1.bf16.msra.mxu0 %v328
    %771 = vmatprep.subr.bf16.mxu0 %v333
    %772 = vmatpush1.bf16.msra.mxu0 %v332
    %773 = vmatprep.subr.bf16.mxu0 %v337
    %774 = vmatpush1.bf16.msra.mxu0 %v336
    %775 = vmatprep.subr.bf16.mxu0 %v341
    %776 = vmatpush1.bf16.msra.mxu0 %v340
    %777 = vmatprep.subr.bf16.mxu0 %v345
    %778 = vmatpush1.bf16.msra.mxu0 %v344
    %779 = vmatprep.subr.bf16.mxu0 %v349
    %780 = vmatpush1.bf16.msra.mxu0 %v348
    %781 = vmatprep.subr.bf16.mxu0 0
    %782 = vmatpush1.bf16.msra.mxu0 0
    %783 = vmatprep.subr.bf16.mxu0 0
    %784 = vmatpush1.bf16.msra.mxu0 0
    %785 = vmatprep.subr.bf16.mxu0 0
    %786 = vmatpush1.bf16.msra.mxu0 0
    %787 = vmatprep.subr.bf16.mxu0 0
    %788 = vmatpush1.bf16.msra.mxu0 0
    %789 = vmatprep.subr.bf16.mxu0 0
    %790 = vmatpush1.bf16.msra.mxu0 0
    %791 = vmatprep.subr.bf16.mxu0 0
    %792 = vmatpush1.bf16.msra.mxu0 0
    %793 = vmatprep.subr.bf16.mxu0 0
    %794 = vmatpush1.bf16.msra.mxu0 0
    %795 = vmatprep.subr.bf16.mxu0 0
    %796 = vmatpush1.bf16.msra.mxu0 0
    %797 = vmatprep.mubr.bf16.mxu0 0
    %798 = vmatmul.mubr.bf16.gmra.mrb[0].mxu0 %v763
    %v799 = vpop.f32.mrb[0].mxu0
    %v800 = vadd.f32 0.0, %v799
    %v801 = vpop.f32.mrb[0].mxu0
    %v802 = vadd.f32 0.0, %v801
    %v803 = vpop.f32.mrb[0].mxu0
    %v804 = vpop.f32.mrb[0].mxu0
    %805 = vdwg.mxu0
    %806 = vmatprep.subr.bf16.mxu0 %v323
    %807 = vmatpush1.bf16.msra.mxu0 %v322
    %808 = vmatprep.subr.bf16.mxu0 %v327
    %809 = vmatpush1.bf16.msra.mxu0 %v326
    %810 = vmatprep.subr.bf16.mxu0 %v331
    %811 = vmatpush1.bf16.msra.mxu0 %v330
    %812 = vmatprep.subr.bf16.mxu0 %v335
    %813 = vmatpush1.bf16.msra.mxu0 %v334
    %814 = vmatprep.subr.bf16.mxu0 %v339
    %815 = vmatpush1.bf16.msra.mxu0 %v338
    %816 = vmatprep.subr.bf16.mxu0 %v343
    %817 = vmatpush1.bf16.msra.mxu0 %v342
    %818 = vmatprep.subr.bf16.mxu0 %v347
    %819 = vmatpush1.bf16.msra.mxu0 %v346
    %820 = vmatprep.subr.bf16.mxu0 %v351
    %821 = vmatpush1.bf16.msra.mxu0 %v350
    %822 = vmatprep.subr.bf16.mxu0 0
    %823 = vmatpush1.bf16.msra.mxu0 0
    %824 = vmatprep.subr.bf16.mxu0 0
    %825 = vmatpush1.bf16.msra.mxu0 0
    %826 = vmatprep.subr.bf16.mxu0 0
    %827 = vmatpush1.bf16.msra.mxu0 0
    %828 = vmatprep.subr.bf16.mxu0 0
    %829 = vmatpush1.bf16.msra.mxu0 0
    %830 = vmatprep.subr.bf16.mxu0 0
    %831 = vmatpush1.bf16.msra.mxu0 0
    %832 = vmatprep.subr.bf16.mxu0 0
    %833 = vmatpush1.bf16.msra.mxu0 0
    %834 = vmatprep.subr.bf16.mxu0 0
    %835 = vmatpush1.bf16.msra.mxu0 0
    %836 = vmatprep.subr.bf16.mxu0 0
    %837 = vmatpush1.bf16.msra.mxu0 0
    %838 = vmatprep.mubr.bf16.mxu0 0
    %839 = vmatmul.mubr.bf16.gmra.mrb[0].mxu0 %v763
    %v840 = vpop.f32.mrb[0].mxu0
    %v841 = vadd.f32 0.0, %v840
    %v842 = vpop.f32.mrb[0].mxu0
    %v843 = vadd.f32 0.0, %v842
    %v844 = vpop.f32.mrb[0].mxu0
    %v845 = vpop.f32.mrb[0].mxu0
    %846 = vdwg.mxu0
    %v851 = vrot.slane %v800, 2
    %v852 = vrot.slane %v802, 2
    %v853 = vrot.slane %v841, 2
    %v854 = vrot.slane %v843, 2
    %v859 = vadd.f32 %v757, %v851
    %v860 = vadd.f32 %v758, %v852
    %v861 = vadd.f32 %v759, %v853
    %v862 = vadd.f32 %v760, %v854
    %v863 = vxor.u32 %v859, 2147483648
    %v864 = vmul.f32 %v863, 1.442695
    %v865 = vpow.pop %v864
    %v866 = vadd.f32 %v865, 1.0
    %v867 = vrcp.pop %v866
    %v868 = vmul.f32 1.0, %v867
    %v869 = vxor.u32 %v860, 2147483648
    %v870 = vmul.f32 %v869, 1.442695
    %v871 = vpow.pop %v870
    %v872 = vadd.f32 %v871, 1.0
    %v873 = vrcp.pop %v872
    %v874 = vmul.f32 1.0, %v873
    %v875 = vtanh.pop %v861
    %v876 = vxor.u32 %v862, 2147483648
    %v877 = vmul.f32 %v876, 1.442695
    %v878 = vpow.pop %v877
    %v879 = vadd.f32 %v878, 1.0
    %v880 = vrcp.pop %v879
    %v881 = vmul.f32 1.0, %v880
    %v883 = vrot.slane %v754, 6
    %v885 = vmul.f32 %v874, %v883
    %v886 = vmul.f32 %v868, %v875
    %v887 = vadd.f32 %v885, %v886
    %v888 = vtanh.pop %v887
    %v889 = vmul.f32 %v881, %v888
    %v890 = vld [vmem:[#allocation2 + $0x20] sm:$0x3]
    %v891 = vld [vmem:[#allocation2 + $0x28] sm:$0x3]
    %v892 = vld [vmem:[#allocation2 + $0x30] sm:$0x3]
    %v893 = vld [vmem:[#allocation2 + $0x38] sm:$0x3]
    %v894 = vpack.c.bf16 %v889, %v889
    %v896 = vrot.slane %v894, 3
    %898 = vmatprep.subr.bf16.mxu0 %v321
    %899 = vmatpush1.bf16.msra.mxu0 %v320
    %900 = vmatprep.subr.bf16.mxu0 %v325
    %901 = vmatpush1.bf16.msra.mxu0 %v324
    %902 = vmatprep.subr.bf16.mxu0 %v329
    %903 = vmatpush1.bf16.msra.mxu0 %v328
    %904 = vmatprep.subr.bf16.mxu0 %v333
    %905 = vmatpush1.bf16.msra.mxu0 %v332
    %906 = vmatprep.subr.bf16.mxu0 %v337
    %907 = vmatpush1.bf16.msra.mxu0 %v336
    %908 = vmatprep.subr.bf16.mxu0 %v341
    %909 = vmatpush1.bf16.msra.mxu0 %v340
    %910 = vmatprep.subr.bf16.mxu0 %v345
    %911 = vmatpush1.bf16.msra.mxu0 %v344
    %912 = vmatprep.subr.bf16.mxu0 %v349
    %913 = vmatpush1.bf16.msra.mxu0 %v348
    %914 = vmatprep.subr.bf16.mxu0 0
    %915 = vmatpush1.bf16.msra.mxu0 0
    %916 = vmatprep.subr.bf16.mxu0 0
    %917 = vmatpush1.bf16.msra.mxu0 0
    %918 = vmatprep.subr.bf16.mxu0 0
    %919 = vmatpush1.bf16.msra.mxu0 0
    %920 = vmatprep.subr.bf16.mxu0 0
    %921 = vmatpush1.bf16.msra.mxu0 0
    %922 = vmatprep.subr.bf16.mxu0 0
    %923 = vmatpush1.bf16.msra.mxu0 0
    %924 = vmatprep.subr.bf16.mxu0 0
    %925 = vmatpush1.bf16.msra.mxu0 0
    %926 = vmatprep.subr.bf16.mxu0 0
    %927 = vmatpush1.bf16.msra.mxu0 0
    %928 = vmatprep.subr.bf16.mxu0 0
    %929 = vmatpush1.bf16.msra.mxu0 0
    %930 = vmatprep.mubr.bf16.mxu0 0
    %931 = vmatmul.mubr.bf16.gmra.mrb[0].mxu0 %v896
    %v932 = vpop.f32.mrb[0].mxu0
    %v933 = vadd.f32 0.0, %v932
    %v934 = vpop.f32.mrb[0].mxu0
    %v935 = vadd.f32 0.0, %v934
    %v936 = vpop.f32.mrb[0].mxu0
    %v937 = vpop.f32.mrb[0].mxu0
    %938 = vdwg.mxu0
    %939 = vmatprep.subr.bf16.mxu0 %v323
    %940 = vmatpush1.bf16.msra.mxu0 %v322
    %941 = vmatprep.subr.bf16.mxu0 %v327
    %942 = vmatpush1.bf16.msra.mxu0 %v326
    %943 = vmatprep.subr.bf16.mxu0 %v331
    %944 = vmatpush1.bf16.msra.mxu0 %v330
    %945 = vmatprep.subr.bf16.mxu0 %v335
    %946 = vmatpush1.bf16.msra.mxu0 %v334
    %947 = vmatprep.subr.bf16.mxu0 %v339
    %948 = vmatpush1.bf16.msra.mxu0 %v338
    %949 = vmatprep.subr.bf16.mxu0 %v343
    %950 = vmatpush1.bf16.msra.mxu0 %v342
    %951 = vmatprep.subr.bf16.mxu0 %v347
    %952 = vmatpush1.bf16.msra.mxu0 %v346
    %953 = vmatprep.subr.bf16.mxu0 %v351
    %954 = vmatpush1.bf16.msra.mxu0 %v350
    %955 = vmatprep.subr.bf16.mxu0 0
    %956 = vmatpush1.bf16.msra.mxu0 0
    %957 = vmatprep.subr.bf16.mxu0 0
    %958 = vmatpush1.bf16.msra.mxu0 0
    %959 = vmatprep.subr.bf16.mxu0 0
    %960 = vmatpush1.bf16.msra.mxu0 0
    %961 = vmatprep.subr.bf16.mxu0 0
    %962 = vmatpush1.bf16.msra.mxu0 0
    %963 = vmatprep.subr.bf16.mxu0 0
    %964 = vmatpush1.bf16.msra.mxu0 0
    %965 = vmatprep.subr.bf16.mxu0 0
    %966 = vmatpush1.bf16.msra.mxu0 0
    %967 = vmatprep.subr.bf16.mxu0 0
    %968 = vmatpush1.bf16.msra.mxu0 0
    %969 = vmatprep.subr.bf16.mxu0 0
    %970 = vmatpush1.bf16.msra.mxu0 0
    %971 = vmatprep.mubr.bf16.mxu0 0
    %972 = vmatmul.mubr.bf16.gmra.mrb[0].mxu0 %v896
    %v973 = vpop.f32.mrb[0].mxu0
    %v974 = vadd.f32 0.0, %v973
    %v975 = vpop.f32.mrb[0].mxu0
    %v976 = vadd.f32 0.0, %v975
    %v977 = vpop.f32.mrb[0].mxu0
    %v978 = vpop.f32.mrb[0].mxu0
    %979 = vdwg.mxu0
    %v980 = vadd.f32 %v890, %v933
    %v981 = vadd.f32 %v891, %v935
    %v982 = vadd.f32 %v892, %v974
    %v983 = vadd.f32 %v893, %v976
    %v984 = vxor.u32 %v980, 2147483648
    %v985 = vmul.f32 %v984, 1.442695
    %v986 = vpow.pop %v985
    %v987 = vadd.f32 %v986, 1.0
    %v988 = vrcp.pop %v987
    %v989 = vmul.f32 1.0, %v988
    %v990 = vxor.u32 %v981, 2147483648
    %v991 = vmul.f32 %v990, 1.442695
    %v992 = vpow.pop %v991
    %v993 = vadd.f32 %v992, 1.0
    %v994 = vrcp.pop %v993
    %v995 = vmul.f32 1.0, %v994
    %v996 = vtanh.pop %v982
    %v997 = vxor.u32 %v983, 2147483648
    %v998 = vmul.f32 %v997, 1.442695
    %v999 = vpow.pop %v998
    %v1000 = vadd.f32 %v999, 1.0
    %v1001 = vrcp.pop %v1000
    %v1002 = vmul.f32 1.0, %v1001
    %v1004 = vrot.slane %v887, 6
    %v1006 = vmul.f32 %v995, %v1004
    %v1007 = vmul.f32 %v989, %v996
    %v1008 = vadd.f32 %v1006, %v1007
    %v1009 = vtanh.pop %v1008
    %v1010 = vmul.f32 %v1002, %v1009
    %v1011 = vld [vmem:[#allocation2 + $0x20] sm:$0xc]
    %v1012 = vld [vmem:[#allocation2 + $0x28] sm:$0xc]
    %v1013 = vld [vmem:[#allocation2 + $0x30] sm:$0xc]
    %v1014 = vld [vmem:[#allocation2 + $0x38] sm:$0xc]
    %v1015 = vpack.c.bf16 %v1010, %v1010
    %1016 = vmatprep.subr.bf16.mxu0 %v321
    %1017 = vmatpush1.bf16.msra.mxu0 %v320
    %1018 = vmatprep.subr.bf16.mxu0 %v325
    %1019 = vmatpush1.bf16.msra.mxu0 %v324
    %1020 = vmatprep.subr.bf16.mxu0 %v329
    %1021 = vmatpush1.bf16.msra.mxu0 %v328
    %1022 = vmatprep.subr.bf16.mxu0 %v333
    %1023 = vmatpush1.bf16.msra.mxu0 %v332
    %1024 = vmatprep.subr.bf16.mxu0 %v337
    %1025 = vmatpush1.bf16.msra.mxu0 %v336
    %1026 = vmatprep.subr.bf16.mxu0 %v341
    %1027 = vmatpush1.bf16.msra.mxu0 %v340
    %1028 = vmatprep.subr.bf16.mxu0 %v345
    %1029 = vmatpush1.bf16.msra.mxu0 %v344
    %1030 = vmatprep.subr.bf16.mxu0 %v349
    %1031 = vmatpush1.bf16.msra.mxu0 %v348
    %1032 = vmatprep.subr.bf16.mxu0 0
    %1033 = vmatpush1.bf16.msra.mxu0 0
    %1034 = vmatprep.subr.bf16.mxu0 0
    %1035 = vmatpush1.bf16.msra.mxu0 0
    %1036 = vmatprep.subr.bf16.mxu0 0
    %1037 = vmatpush1.bf16.msra.mxu0 0
    %1038 = vmatprep.subr.bf16.mxu0 0
    %1039 = vmatpush1.bf16.msra.mxu0 0
    %1040 = vmatprep.subr.bf16.mxu0 0
    %1041 = vmatpush1.bf16.msra.mxu0 0
    %1042 = vmatprep.subr.bf16.mxu0 0
    %1043 = vmatpush1.bf16.msra.mxu0 0
    %1044 = vmatprep.subr.bf16.mxu0 0
    %1045 = vmatpush1.bf16.msra.mxu0 0
    %1046 = vmatprep.subr.bf16.mxu0 0
    %1047 = vmatpush1.bf16.msra.mxu0 0
    %1048 = vmatprep.mubr.bf16.mxu0 0
    %1049 = vmatmul.mubr.bf16.gmra.mrb[0].mxu0 %v1015
    %v1050 = vpop.f32.mrb[0].mxu0
    %v1051 = vadd.f32 0.0, %v1050
    %v1052 = vpop.f32.mrb[0].mxu0
    %v1053 = vadd.f32 0.0, %v1052
    %v1054 = vpop.f32.mrb[0].mxu0
    %v1055 = vpop.f32.mrb[0].mxu0
    %1056 = vdwg.mxu0
    %1057 = vmatprep.subr.bf16.mxu0 %v323
    %1058 = vmatpush1.bf16.msra.mxu0 %v322
    %1059 = vmatprep.subr.bf16.mxu0 %v327
    %1060 = vmatpush1.bf16.msra.mxu0 %v326
    %1061 = vmatprep.subr.bf16.mxu0 %v331
    %1062 = vmatpush1.bf16.msra.mxu0 %v330
    %1063 = vmatprep.subr.bf16.mxu0 %v335
    %1064 = vmatpush1.bf16.msra.mxu0 %v334
    %1065 = vmatprep.subr.bf16.mxu0 %v339
    %1066 = vmatpush1.bf16.msra.mxu0 %v338
    %1067 = vmatprep.subr.bf16.mxu0 %v343
    %1068 = vmatpush1.bf16.msra.mxu0 %v342
    %1069 = vmatprep.subr.bf16.mxu0 %v347
    %1070 = vmatpush1.bf16.msra.mxu0 %v346
    %1071 = vmatprep.subr.bf16.mxu0 %v351
    %1072 = vmatpush1.bf16.msra.mxu0 %v350
    %1073 = vmatprep.subr.bf16.mxu0 0
    %1074 = vmatpush1.bf16.msra.mxu0 0
    %1075 = vmatprep.subr.bf16.mxu0 0
    %1076 = vmatpush1.bf16.msra.mxu0 0
    %1077 = vmatprep.subr.bf16.mxu0 0
    %1078 = vmatpush1.bf16.msra.mxu0 0
    %1079 = vmatprep.subr.bf16.mxu0 0
    %1080 = vmatpush1.bf16.msra.mxu0 0
    %1081 = vmatprep.subr.bf16.mxu0 0
    %1082 = vmatpush1.bf16.msra.mxu0 0
    %1083 = vmatprep.subr.bf16.mxu0 0
    %1084 = vmatpush1.bf16.msra.mxu0 0
    %1085 = vmatprep.subr.bf16.mxu0 0
    %1086 = vmatpush1.bf16.msra.mxu0 0
    %1087 = vmatprep.subr.bf16.mxu0 0
    %1088 = vmatpush1.bf16.msra.mxu0 0
    %1089 = vmatprep.mubr.bf16.mxu0 0
    %1090 = vmatmul.mubr.bf16.gmra.mrb[0].mxu0 %v1015
    %v1091 = vpop.f32.mrb[0].mxu0
    %v1092 = vadd.f32 0.0, %v1091
    %v1093 = vpop.f32.mrb[0].mxu0
    %v1094 = vadd.f32 0.0, %v1093
    %v1095 = vpop.f32.mrb[0].mxu0
    %v1096 = vpop.f32.mrb[0].mxu0
    %1097 = vdwg.mxu0
    %v1102 = vrot.slane %v1051, 6
    %v1103 = vrot.slane %v1053, 6
    %v1104 = vrot.slane %v1092, 6
    %v1105 = vrot.slane %v1094, 6
    %v1110 = vadd.f32 %v1011, %v1102
    %v1111 = vadd.f32 %v1012, %v1103
    %v1112 = vadd.f32 %v1013, %v1104
    %v1113 = vadd.f32 %v1014, %v1105
    %v1114 = vxor.u32 %v1110, 2147483648
    %v1115 = vmul.f32 %v1114, 1.442695
    %v1116 = vpow.pop %v1115
    %v1117 = vadd.f32 %v1116, 1.0
    %v1118 = vrcp.pop %v1117
    %v1119 = vmul.f32 1.0, %v1118
    %v1120 = vxor.u32 %v1111, 2147483648
    %v1121 = vmul.f32 %v1120, 1.442695
    %v1122 = vpow.pop %v1121
    %v1123 = vadd.f32 %v1122, 1.0
    %v1124 = vrcp.pop %v1123
    %v1125 = vmul.f32 1.0, %v1124
    %v1126 = vtanh.pop %v1112
    %v1127 = vxor.u32 %v1113, 2147483648
    %v1128 = vmul.f32 %v1127, 1.442695
    %v1129 = vpow.pop %v1128
    %v1130 = vadd.f32 %v1129, 1.0
    %v1131 = vrcp.pop %v1130
    %v1132 = vmul.f32 1.0, %v1131
    %v1134 = vrot.slane %v1008, 6
    %v1136 = vmul.f32 %v1125, %v1134
    %v1137 = vmul.f32 %v1119, %v1126
    %v1138 = vadd.f32 %v1136, %v1137
    %v1139 = vtanh.pop %v1138
    %v1140 = vmul.f32 %v1132, %v1139
    %v1141 = vld [vmem:[#allocation2 + $0x20] sm:$0x30]
    %v1142 = vld [vmem:[#allocation2 + $0x28] sm:$0x30]
    %v1143 = vld [vmem:[#allocation2 + $0x30] sm:$0x30]
    %v1144 = vld [vmem:[#allocation2 + $0x38] sm:$0x30]
    %v1145 = vpack.c.bf16 %v1140, %v1140
    %v1147 = vrot.slane %v1145, 1
    %1149 = vmatprep.subr.bf16.mxu0 %v321
    %1150 = vmatpush1.bf16.msra.mxu0 %v320
    %1151 = vmatprep.subr.bf16.mxu0 %v325
    %1152 = vmatpush1.bf16.msra.mxu0 %v324
    %1153 = vmatprep.subr.bf16.mxu0 %v329
    %1154 = vmatpush1.bf16.msra.mxu0 %v328
    %1155 = vmatprep.subr.bf16.mxu0 %v333
    %1156 = vmatpush1.bf16.msra.mxu0 %v332
    %1157 = vmatprep.subr.bf16.mxu0 %v337
    %1158 = vmatpush1.bf16.msra.mxu0 %v336
    %1159 = vmatprep.subr.bf16.mxu0 %v341
    %1160 = vmatpush1.bf16.msra.mxu0 %v340
    %1161 = vmatprep.subr.bf16.mxu0 %v345
    %1162 = vmatpush1.bf16.msra.mxu0 %v344
    %1163 = vmatprep.subr.bf16.mxu0 %v349
    %1164 = vmatpush1.bf16.msra.mxu0 %v348
    %1165 = vmatprep.subr.bf16.mxu0 0
    %1166 = vmatpush1.bf16.msra.mxu0 0
    %1167 = vmatprep.subr.bf16.mxu0 0
    %1168 = vmatpush1.bf16.msra.mxu0 0
    %1169 = vmatprep.subr.bf16.mxu0 0
    %1170 = vmatpush1.bf16.msra.mxu0 0
    %1171 = vmatprep.subr.bf16.mxu0 0
    %1172 = vmatpush1.bf16.msra.mxu0 0
    %1173 = vmatprep.subr.bf16.mxu0 0
    %1174 = vmatpush1.bf16.msra.mxu0 0
    %1175 = vmatprep.subr.bf16.mxu0 0
    %1176 = vmatpush1.bf16.msra.mxu0 0
    %1177 = vmatprep.subr.bf16.mxu0 0
    %1178 = vmatpush1.bf16.msra.mxu0 0
    %1179 = vmatprep.subr.bf16.mxu0 0
    %1180 = vmatpush1.bf16.msra.mxu0 0
    %1181 = vmatprep.mubr.bf16.mxu0 0
    %1182 = vmatmul.mubr.bf16.gmra.mrb[0].mxu0 %v1147
    %v1183 = vpop.f32.mrb[0].mxu0
    %v1184 = vadd.f32 0.0, %v1183
    %v1185 = vpop.f32.mrb[0].mxu0
    %v1186 = vadd.f32 0.0, %v1185
    %v1187 = vpop.f32.mrb[0].mxu0
    %v1188 = vpop.f32.mrb[0].mxu0
    %1189 = vdwg.mxu0
    %1190 = vmatprep.subr.bf16.mxu0 %v323
    %1191 = vmatpush1.bf16.msra.mxu0 %v322
    %1192 = vmatprep.subr.bf16.mxu0 %v327
    %1193 = vmatpush1.bf16.msra.mxu0 %v326
    %1194 = vmatprep.subr.bf16.mxu0 %v331
    %1195 = vmatpush1.bf16.msra.mxu0 %v330
    %1196 = vmatprep.subr.bf16.mxu0 %v335
    %1197 = vmatpush1.bf16.msra.mxu0 %v334
    %1198 = vmatprep.subr.bf16.mxu0 %v339
    %1199 = vmatpush1.bf16.msra.mxu0 %v338
    %1200 = vmatprep.subr.bf16.mxu0 %v343
    %1201 = vmatpush1.bf16.msra.mxu0 %v342
    %1202 = vmatprep.subr.bf16.mxu0 %v347
    %1203 = vmatpush1.bf16.msra.mxu0 %v346
    %1204 = vmatprep.subr.bf16.mxu0 %v351
    %1205 = vmatpush1.bf16.msra.mxu0 %v350
    %1206 = vmatprep.subr.bf16.mxu0 0
    %1207 = vmatpush1.bf16.msra.mxu0 0
    %1208 = vmatprep.subr.bf16.mxu0 0
    %1209 = vmatpush1.bf16.msra.mxu0 0
    %1210 = vmatprep.subr.bf16.mxu0 0
    %1211 = vmatpush1.bf16.msra.mxu0 0
    %1212 = vmatprep.subr.bf16.mxu0 0
    %1213 = vmatpush1.bf16.msra.mxu0 0
    %1214 = vmatprep.subr.bf16.mxu0 0
    %1215 = vmatpush1.bf16.msra.mxu0 0
    %1216 = vmatprep.subr.bf16.mxu0 0
    %1217 = vmatpush1.bf16.msra.mxu0 0
    %1218 = vmatprep.subr.bf16.mxu0 0
    %1219 = vmatpush1.bf16.msra.mxu0 0
    %1220 = vmatprep.subr.bf16.mxu0 0
    %1221 = vmatpush1.bf16.msra.mxu0 0
    %1222 = vmatprep.mubr.bf16.mxu0 0
    %1223 = vmatmul.mubr.bf16.gmra.mrb[0].mxu0 %v1147
    %v1224 = vpop.f32.mrb[0].mxu0
    %v1225 = vadd.f32 0.0, %v1224
    %v1226 = vpop.f32.mrb[0].mxu0
    %v1227 = vadd.f32 0.0, %v1226
    %v1228 = vpop.f32.mrb[0].mxu0
    %v1229 = vpop.f32.mrb[0].mxu0
    %1230 = vdwg.mxu0
    %v1235 = vrot.slane %v1184, 4
    %v1236 = vrot.slane %v1186, 4
    %v1237 = vrot.slane %v1225, 4
    %v1238 = vrot.slane %v1227, 4
    %v1243 = vadd.f32 %v1141, %v1235
    %v1244 = vadd.f32 %v1142, %v1236
    %v1245 = vadd.f32 %v1143, %v1237
    %v1246 = vadd.f32 %v1144, %v1238
    %v1247 = vxor.u32 %v1243, 2147483648
    %v1248 = vmul.f32 %v1247, 1.442695
    %v1249 = vpow.pop %v1248
    %v1250 = vadd.f32 %v1249, 1.0
    %v1251 = vrcp.pop %v1250
    %v1252 = vmul.f32 1.0, %v1251
    %v1253 = vxor.u32 %v1244, 2147483648
    %v1254 = vmul.f32 %v1253, 1.442695
    %v1255 = vpow.pop %v1254
    %v1256 = vadd.f32 %v1255, 1.0
    %v1257 = vrcp.pop %v1256
    %v1258 = vmul.f32 1.0, %v1257
    %v1259 = vtanh.pop %v1245
    %v1260 = vxor.u32 %v1246, 2147483648
    %v1261 = vmul.f32 %v1260, 1.442695
    %v1262 = vpow.pop %v1261
    %v1263 = vadd.f32 %v1262, 1.0
    %v1264 = vrcp.pop %v1263
    %v1265 = vmul.f32 1.0, %v1264
    %v1267 = vrot.slane %v1138, 6
    %v1269 = vmul.f32 %v1258, %v1267
    %v1270 = vmul.f32 %v1252, %v1259
    %v1271 = vadd.f32 %v1269, %v1270
    %v1272 = vtanh.pop %v1271
    %v1273 = vmul.f32 %v1265, %v1272
    %v1274 = vld [vmem:[#allocation2 + $0x20] sm:$0xc0]
    %v1275 = vld [vmem:[#allocation2 + $0x28] sm:$0xc0]
    %v1276 = vld [vmem:[#allocation2 + $0x30] sm:$0xc0]
    %v1277 = vld [vmem:[#allocation2 + $0x38] sm:$0xc0]
    %v1278 = vpack.c.bf16 %v1273, %v1273
    %v1280 = vrot.slane %v1278, 2
    %1282 = vmatprep.subr.bf16.mxu0 %v321
    %1283 = vmatpush1.bf16.msra.mxu0 %v320
    %1284 = vmatprep.subr.bf16.mxu0 %v325
    %1285 = vmatpush1.bf16.msra.mxu0 %v324
    %1286 = vmatprep.subr.bf16.mxu0 %v329
    %1287 = vmatpush1.bf16.msra.mxu0 %v328
    %1288 = vmatprep.subr.bf16.mxu0 %v333
    %1289 = vmatpush1.bf16.msra.mxu0 %v332
    %1290 = vmatprep.subr.bf16.mxu0 %v337
    %1291 = vmatpush1.bf16.msra.mxu0 %v336
    %1292 = vmatprep.subr.bf16.mxu0 %v341
    %1293 = vmatpush1.bf16.msra.mxu0 %v340
    %1294 = vmatprep.subr.bf16.mxu0 %v345
    %1295 = vmatpush1.bf16.msra.mxu0 %v344
    %1296 = vmatprep.subr.bf16.mxu0 %v349
    %1297 = vmatpush1.bf16.msra.mxu0 %v348
    %1298 = vmatprep.subr.bf16.mxu0 0
    %1299 = vmatpush1.bf16.msra.mxu0 0
    %1300 = vmatprep.subr.bf16.mxu0 0
    %1301 = vmatpush1.bf16.msra.mxu0 0
    %1302 = vmatprep.subr.bf16.mxu0 0
    %1303 = vmatpush1.bf16.msra.mxu0 0
    %1304 = vmatprep.subr.bf16.mxu0 0
    %1305 = vmatpush1.bf16.msra.mxu0 0
    %1306 = vmatprep.subr.bf16.mxu0 0
    %1307 = vmatpush1.bf16.msra.mxu0 0
    %1308 = vmatprep.subr.bf16.mxu0 0
    %1309 = vmatpush1.bf16.msra.mxu0 0
    %1310 = vmatprep.subr.bf16.mxu0 0
    %1311 = vmatpush1.bf16.msra.mxu0 0
    %1312 = vmatprep.subr.bf16.mxu0 0
    %1313 = vmatpush1.bf16.msra.mxu0 0
    %1314 = vmatprep.mubr.bf16.mxu0 0
    %1315 = vmatmul.mubr.bf16.gmra.mrb[0].mxu0 %v1280
    %v1316 = vpop.f32.mrb[0].mxu0
    %v1317 = vadd.f32 0.0, %v1316
    %v1318 = vpop.f32.mrb[0].mxu0
    %v1319 = vadd.f32 0.0, %v1318
    %v1320 = vpop.f32.mrb[0].mxu0
    %v1321 = vpop.f32.mrb[0].mxu0
    %1322 = vdwg.mxu0
    %1323 = vmatprep.subr.bf16.mxu0 %v323
    %1324 = vmatpush1.bf16.msra.mxu0 %v322
    %1325 = vmatprep.subr.bf16.mxu0 %v327
    %1326 = vmatpush1.bf16.msra.mxu0 %v326
    %1327 = vmatprep.subr.bf16.mxu0 %v331
    %1328 = vmatpush1.bf16.msra.mxu0 %v330
    %1329 = vmatprep.subr.bf16.mxu0 %v335
    %1330 = vmatpush1.bf16.msra.mxu0 %v334
    %1331 = vmatprep.subr.bf16.mxu0 %v339
    %1332 = vmatpush1.bf16.msra.mxu0 %v338
    %1333 = vmatprep.subr.bf16.mxu0 %v343
    %1334 = vmatpush1.bf16.msra.mxu0 %v342
    %1335 = vmatprep.subr.bf16.mxu0 %v347
    %1336 = vmatpush1.bf16.msra.mxu0 %v346
    %1337 = vmatprep.subr.bf16.mxu0 %v351
    %1338 = vmatpush1.bf16.msra.mxu0 %v350
    %1339 = vmatprep.subr.bf16.mxu0 0
    %1340 = vmatpush1.bf16.msra.mxu0 0
    %1341 = vmatprep.subr.bf16.mxu0 0
    %1342 = vmatpush1.bf16.msra.mxu0 0
    %1343 = vmatprep.subr.bf16.mxu0 0
    %1344 = vmatpush1.bf16.msra.mxu0 0
    %1345 = vmatprep.subr.bf16.mxu0 0
    %1346 = vmatpush1.bf16.msra.mxu0 0
    %1347 = vmatprep.subr.bf16.mxu0 0
    %1348 = vmatpush1.bf16.msra.mxu0 0
    %1349 = vmatprep.subr.bf16.mxu0 0
    %1350 = vmatpush1.bf16.msra.mxu0 0
    %1351 = vmatprep.subr.bf16.mxu0 0
    %1352 = vmatpush1.bf16.msra.mxu0 0
    %1353 = vmatprep.subr.bf16.mxu0 0
    %1354 = vmatpush1.bf16.msra.mxu0 0
    %1355 = vmatprep.mubr.bf16.mxu0 0
    %1356 = vmatmul.mubr.bf16.gmra.mrb[0].mxu0 %v1280
    %v1357 = vpop.f32.mrb[0].mxu0
    %v1358 = vadd.f32 0.0, %v1357
    %v1359 = vpop.f32.mrb[0].mxu0
    %v1360 = vadd.f32 0.0, %v1359
    %v1361 = vpop.f32.mrb[0].mxu0
    %v1362 = vpop.f32.mrb[0].mxu0
    %1363 = vdwg.mxu0
    %v1368 = vrot.slane %v1317, 2
    %v1369 = vrot.slane %v1319, 2
    %v1370 = vrot.slane %v1358, 2
    %v1371 = vrot.slane %v1360, 2
    %v1376 = vadd.f32 %v1274, %v1368
    %v1377 = vadd.f32 %v1275, %v1369
    %v1378 = vadd.f32 %v1276, %v1370
    %v1379 = vadd.f32 %v1277, %v1371
    %v1380 = vxor.u32 %v1376, 2147483648
    %v1381 = vmul.f32 %v1380, 1.442695
    %v1382 = vpow.pop %v1381
    %v1383 = vadd.f32 %v1382, 1.0
    %v1384 = vrcp.pop %v1383
    %v1385 = vmul.f32 1.0, %v1384
    %v1386 = vxor.u32 %v1377, 2147483648
    %v1387 = vmul.f32 %v1386, 1.442695
    %v1388 = vpow.pop %v1387
    %v1389 = vadd.f32 %v1388, 1.0
    %v1390 = vrcp.pop %v1389
    %v1391 = vmul.f32 1.0, %v1390
    %v1392 = vtanh.pop %v1378
    %v1393 = vxor.u32 %v1379, 2147483648
    %v1394 = vmul.f32 %v1393, 1.442695
    %v1395 = vpow.pop %v1394
    %v1396 = vadd.f32 %v1395, 1.0
    %v1397 = vrcp.pop %v1396
    %v1398 = vmul.f32 1.0, %v1397
    %v1400 = vrot.slane %v1271, 6
    %v1402 = vmul.f32 %v1391, %v1400
    %v1403 = vmul.f32 %v1385, %v1392
    %v1404 = vadd.f32 %v1402, %v1403
    %v1405 = vtanh.pop %v1404
    %v1406 = vmul.f32 %v1398, %v1405
    %vm1407 = vcmask 261126
    %1408 = vst.msk [vmem:[#allocation6 - $0x6] sm:$0xc0] %vm1407, %v1406
    // Predicated region
    $region22: #{lstm_encoder_forward.1} parent=1 // pred_check
      _
    $region23: #{lstm_encoder_forward.1} parent=1 // pred_check_branch
      %1410 = sbr.rel (0) target = $region25
    $region24: #{lstm_encoder_forward.1} parent=1 // pred_region
      %s1412 = ssub.s32 32, 32
      %1413 = vsyncadd [#allocation5], %s1412
      %s1415 = sshll.u32 [#allocation6], 4
      %s1416 = int_to_ptr.vmem [resolvable:$true] %s1415
      %1418 = dma.vmem_to_hbm [thread:$0]  %s1416, 32, %s4, [#allocation5]
    $region25: #{lstm_encoder_forward.1} parent=1 // pred_fallthru
      _
    // Predicated region
    $region26: #{lstm_encoder_forward.1} parent=1 // pred_check
      _
    $region27: #{lstm_encoder_forward.1} parent=1 // pred_check_branch
      %1420 = sbr.rel (0) target = $region29
    $region28: #{lstm_encoder_forward.1} parent=1 // pred_region
      %1421 = dma.done [#allocation5], 32
    $region29: #{lstm_encoder_forward.1} parent=1 // pred_fallthru
      _
    %1422 = vsyncpa [#allocation4], 1
    %1423 = vsyncpa [#allocation5], 1

</llo_original>
